<compile_context>
chip_gen: v7x
topology: tpu7x:2x2x1
jax: 0.10.0
libtpu: 0.0.40
codegen_flags: <defaults>
</compile_context>

<pallas_src>
import functools
import math

import jax
import jax.numpy as jnp
from jax import lax
from jax.experimental import pallas as pl
from jax.experimental.pallas import tpu as pltpu


def l1outub_kernel(x_ref, y_ref,
                   w1m_ref, b1m_ref, w2m_ref, b2m_ref,
                   w1v_ref, b1v_ref, w2v_ref, b2v_ref,
                   out_ref,
                   sy_ref, sy2_ref, shi_ref, smuiv_ref, smu2hi_ref,
                   pos_ref, lv_ref,
                   *, n_total, lse_shift):
    step = pl.program_id(0)

    @pl.when(step == 0)
    def _init():
        sy_ref[...] = jnp.zeros_like(sy_ref)
        sy2_ref[...] = jnp.zeros_like(sy2_ref)
        shi_ref[...] = jnp.zeros_like(shi_ref)
        smuiv_ref[...] = jnp.zeros_like(smuiv_ref)
        smu2hi_ref[...] = jnp.zeros_like(smu2hi_ref)
        pos_ref[...] = jnp.zeros_like(pos_ref)
        lv_ref[...] = jnp.zeros_like(lv_ref)

    x = x_ref[...]                      # [bn, D] row tile
    y = y_ref[...]                      # [bn, D] row tile (same rows as x)

    hp = lax.Precision.HIGHEST
    f32 = jnp.float32

    # --- MLPs: shared-input branches kept as separate small matmuls (no zero padding) ---
    hm = jnp.maximum(
        jnp.dot(x, w1m_ref[...], precision=hp, preferred_element_type=f32) + b1m_ref[...], 0.0)
    hv = jnp.maximum(
        jnp.dot(x, w1v_ref[...], precision=hp, preferred_element_type=f32) + b1v_ref[...], 0.0)
    mu = jnp.dot(hm, w2m_ref[...], precision=hp, preferred_element_type=f32) + b2m_ref[...]
    logvar = jnp.tanh(
        jnp.dot(hv, w2v_ref[...], precision=hp, preferred_element_type=f32) + b2v_ref[...])

    inv_var = jnp.exp(-logvar)          # one transcendental pass; every divide -> multiply
    half_inv = 0.5 * inv_var

    # positive_i = sum_d [ -(mu_i - y_i)^2 / (2 var_i) - logvar_i / 2 ]
    diff = mu - y
    pos_rows = jnp.sum(-(diff * diff) * half_inv - 0.5 * logvar, axis=1, keepdims=True)  # [bn,1]

    # Accumulate everything needed for mean(all_probs) in O(bn*D) per step:
    #   sum_{i,j,d} -(y_j - mu_i)^2 * half_inv_i
    #     = sum_d [ (sum_i mu_i*inv_var_i) * Sy  -  (sum_i half_inv_i) * Sy2
    #               - N * sum_i mu_i^2*half_inv_i ]
    sy_ref[...] += jnp.sum(y, axis=0, keepdims=True)                        # Sy[d]
    sy2_ref[...] += jnp.sum(y * y, axis=0, keepdims=True)                   # Sy2[d]
    shi_ref[...] += jnp.sum(half_inv, axis=0, keepdims=True)                # sum_i half_inv
    smuiv_ref[...] += jnp.sum(mu * inv_var, axis=0, keepdims=True)          # sum_i mu*inv_var
    smu2hi_ref[...] += jnp.sum(mu * mu * half_inv, axis=0, keepdims=True)   # sum_i mu^2*half_inv
    pos_ref[...] += jnp.sum(pos_rows, axis=0, keepdims=True)                # sum_i positive_i
    lv_ref[...] += jnp.sum(jnp.sum(logvar, axis=1, keepdims=True), axis=0, keepdims=True)

    @pl.when(step == pl.num_programs(0) - 1)
    def _finalize():
        n = jnp.float32(n_total)
        cross = jnp.sum(
            smuiv_ref[...] * sy_ref[...]
            - shi_ref[...] * sy2_ref[...]
            - n * smu2hi_ref[...],
            axis=1, keepdims=True)                              # [1,1]
        sum_all_probs = cross - 0.5 * n * lv_ref[...]           # [1,1]
        # Reference masked-LSE over the [N,N,N] broadcast collapses to a constant shift:
        #   negative = all_probs + log(N-1 + e^-20) - log(N-1)
        upper = pos_ref[...] / n - sum_all_probs / (n * n) - jnp.float32(lse_shift)
        out_ref[...] = upper


def _row_block(n, target=512):
    """Largest row-tile that divides n, is a multiple of 8, and is <= target."""
    if n <= target:
        return n
    for b in range(target, 7, -1):
        if n % b == 0 and b % 8 == 0:
            return b
    return n  # fallback: single block


def l1outub_forward(x, y, params):
    N, D = x.shape
    assert N >= 2, "L1OutUB requires batch_size >= 2 (log(N-1) in the estimator)"
    hh = params["w1m"].shape[1]

    bn = _row_block(N)
    grid = (N // bn,)

    lse_shift = math.log((N - 1.0) + math.exp(-20.0)) - math.log(N - 1.0)
    kernel = functools.partial(l1outub_kernel, n_total=float(N), lse_shift=lse_shift)

    def full(shape):
        return pl.BlockSpec(shape, lambda i: (0, 0))

    def rows(shape):
        return pl.BlockSpec(shape, lambda i: (i, 0))

    grid_spec = pltpu.PrefetchScalarGridSpec(
        num_scalar_prefetch=0,
        grid=grid,
        in_specs=[
            rows((bn, D)),                       # x (streamed row tiles)
            rows((bn, D)),                       # y (streamed row tiles)
            full((D, hh)), full((1, hh)),        # w1m, b1m
            full((hh, D)), full((1, D)),         # w2m, b2m
            full((D, hh)), full((1, hh)),        # w1v, b1v
            full((hh, D)), full((1, D)),         # w2v, b2v
        ],
        out_specs=pl.BlockSpec((1, 1), lambda i: (0, 0)),
        scratch_shapes=[pltpu.VMEM((1, D), jnp.float32)] * 5
                      + [pltpu.VMEM((1, 1), jnp.float32)] * 2,
    )

    out = pl.pallas_call(
        kernel,
        out_shape=jax.ShapeDtypeStruct((1, 1), jnp.float32),
        grid_spec=grid_spec,
        compiler_params=pltpu.CompilerParams(
            dimension_semantics=("arbitrary",),      # reduction axis (accumulators carried)
            vmem_limit_bytes=48 * 1024 * 1024,       # explicit budget; fits v7x's 64 MiB VMEM
        ),
    )(x, y,
      params["w1m"], params["b1m"], params["w2m"], params["b2m"],
      params["w1v"], params["b1v"], params["w2v"], params["b2v"])
    return out[0, 0]


def l1outub_reference(x, y, params):
    """Pure-JAX mirror of the PyTorch forward (for a correctness self-check)."""
    hp = lax.Precision.HIGHEST
    hm = jnp.maximum(jnp.dot(x, params["w1m"], precision=hp) + params["b1m"], 0.0)
    hv = jnp.maximum(jnp.dot(x, params["w1v"], precision=hp) + params["b1v"], 0.0)
    mu = jnp.dot(hm, params["w2m"], precision=hp) + params["b2m"]
    logvar = jnp.tanh(jnp.dot(hv, params["w2v"], precision=hp) + params["b2v"])
    N = y.shape[0]
    positive = jnp.sum(-(mu - y) ** 2 / 2.0 / jnp.exp(logvar) - logvar / 2.0, axis=-1)
    mu1, lv1, y1 = mu[:, None, :], logvar[:, None, :], y[None, :, :]
    all_probs = jnp.sum(-(y1 - mu1) ** 2 / 2.0 / jnp.exp(lv1) - lv1 / 2.0, axis=-1)   # [N,N]
    diag_mask = (jnp.eye(N, dtype=x.dtype) * -20.0)[:, :, None]                        # [N,N,1]
    negative = jax.scipy.special.logsumexp(all_probs + diag_mask, axis=0) - jnp.log(N - 1.0)
    upper = jnp.mean(positive - negative)
    return upper  # forward value of loglikeli + (-loglikeli + upper).detach()


def init_params(key, dim, hidden_size):
    """Deterministic init mirroring nn.Linear default (uniform +/- 1/sqrt(fan_in))."""
    h = hidden_size // 2
    ks = jax.random.split(key, 8)

    def lin(kw, kb, fan_in, fan_out):
        bound = 1.0 / math.sqrt(fan_in)
        w = jax.random.uniform(kw, (fan_in, fan_out), jnp.float32, -bound, bound)
        b = jax.random.uniform(kb, (1, fan_out), jnp.float32, -bound, bound)
        return w, b

    w1m, b1m = lin(ks[0], ks[1], dim, h)
    w2m, b2m = lin(ks[2], ks[3], h, dim)
    w1v, b1v = lin(ks[4], ks[5], dim, h)
    w2v, b2v = lin(ks[6], ks[7], h, dim)
    return dict(w1m=w1m, b1m=b1m, w2m=w2m, b2m=b2m,
                w1v=w1v, b1v=b1v, w2v=w2v, b2v=b2v)


if __name__ == "__main__":
    N, dim, hidden = 8, 32, 32   # batch=8, feature dim=32, hidden_size=32 (hidden//2 = 16)

    key = jax.random.PRNGKey(0)
    kx, ky, kp = jax.random.split(key, 3)
    x_samples = jax.random.normal(kx, (N, dim), jnp.float32)
    y_samples = jax.random.normal(ky, (N, dim), jnp.float32)
    params = init_params(kp, dim, hidden)

    out = l1outub_forward(x_samples, y_samples, params)
    jax.block_until_ready(out)

    ref = l1outub_reference(x_samples, y_samples, params)
    jax.block_until_ready(ref)
    assert abs(float(out) - float(ref)) <= 1e-3 * max(1.0, abs(float(ref))), (
        f"kernel={float(out)} reference={float(ref)}")

    print("KERNEL_OK")
</pallas_src>

<mosaic_0001>
module attributes {stable_mosaic.version = 11 : i64} {
  func.func @l1outub_kernel(%arg0: i32, %arg1: memref<8x32xf32, #tpu.memory_space<vmem>>, %arg2: memref<8x32xf32, #tpu.memory_space<vmem>>, %arg3: memref<32x16xf32, #tpu.memory_space<vmem>>, %arg4: memref<1x16xf32, #tpu.memory_space<vmem>>, %arg5: memref<16x32xf32, #tpu.memory_space<vmem>>, %arg6: memref<1x32xf32, #tpu.memory_space<vmem>>, %arg7: memref<32x16xf32, #tpu.memory_space<vmem>>, %arg8: memref<1x16xf32, #tpu.memory_space<vmem>>, %arg9: memref<16x32xf32, #tpu.memory_space<vmem>>, %arg10: memref<1x32xf32, #tpu.memory_space<vmem>>, %arg11: memref<1x1xf32, #tpu.memory_space<vmem>>, %arg12: memref<1x32xf32, #tpu.memory_space<vmem>>, %arg13: memref<1x32xf32, #tpu.memory_space<vmem>>, %arg14: memref<1x32xf32, #tpu.memory_space<vmem>>, %arg15: memref<1x32xf32, #tpu.memory_space<vmem>>, %arg16: memref<1x32xf32, #tpu.memory_space<vmem>>, %arg17: memref<1x1xf32, #tpu.memory_space<vmem>>, %arg18: memref<1x1xf32, #tpu.memory_space<vmem>>) attributes {dimension_semantics = [#tpu.dimension_semantics<arbitrary>], iteration_bounds = array<i64: 1>, scalar_prefetch = 0 : i64, scratch_operands = 7 : i64, tpu.core_type = #tpu.core_type<tc>, window_params = [{transform_indices = @transform_0, window_bounds = array<i64: 8, 32>}, {transform_indices = @transform_1, window_bounds = array<i64: 8, 32>}, {pipeline_mode = #tpu.pipeline_mode<synchronous>, transform_indices = @transform_2, window_bounds = array<i64: 32, 16>}, {pipeline_mode = #tpu.pipeline_mode<synchronous>, transform_indices = @transform_3, window_bounds = array<i64: 1, 16>}, {pipeline_mode = #tpu.pipeline_mode<synchronous>, transform_indices = @transform_4, window_bounds = array<i64: 16, 32>}, {pipeline_mode = #tpu.pipeline_mode<synchronous>, transform_indices = @transform_5, window_bounds = array<i64: 1, 32>}, {pipeline_mode = #tpu.pipeline_mode<synchronous>, transform_indices = @transform_6, window_bounds = array<i64: 32, 16>}, {pipeline_mode = #tpu.pipeline_mode<synchronous>, transform_indices = @transform_7, window_bounds = array<i64: 1, 16>}, {pipeline_mode = #tpu.pipeline_mode<synchronous>, transform_indices = @transform_8, window_bounds = array<i64: 16, 32>}, {pipeline_mode = #tpu.pipeline_mode<synchronous>, transform_indices = @transform_9, window_bounds = array<i64: 1, 32>}, {pipeline_mode = #tpu.pipeline_mode<synchronous>, transform_indices = @transform_10, window_bounds = array<i64: 1, 1>}]} {
    %c0_i32 = arith.constant 0 : i32
    %0 = arith.cmpi eq, %arg0, %c0_i32 : i32
    %1 = arith.extui %0 : i1 to i32
    %c0_i32_0 = arith.constant 0 : i32
    %2 = arith.cmpi ne, %1, %c0_i32_0 : i32
    scf.if %2 {
      %cst_68 = arith.constant 0.000000e+00 : f32
      %89 = vector.broadcast %cst_68 : f32 to vector<1x32xf32>
      %c0_69 = arith.constant 0 : index
      %c0_70 = arith.constant 0 : index
      %90 = vector.load %arg12[%c0_69, %c0_70] : memref<1x32xf32, #tpu.memory_space<vmem>>, vector<1x32xf32>
      tpu.vector_store %arg12[%c0_69, %c0_70], %89 {strides = array<i32>} : memref<1x32xf32, #tpu.memory_space<vmem>>, vector<1x32xf32>,
      %cst_71 = arith.constant 0.000000e+00 : f32
      %91 = vector.broadcast %cst_71 : f32 to vector<1x32xf32>
      %c0_72 = arith.constant 0 : index
      %c0_73 = arith.constant 0 : index
      %92 = vector.load %arg13[%c0_72, %c0_73] : memref<1x32xf32, #tpu.memory_space<vmem>>, vector<1x32xf32>
      tpu.vector_store %arg13[%c0_72, %c0_73], %91 {strides = array<i32>} : memref<1x32xf32, #tpu.memory_space<vmem>>, vector<1x32xf32>,
      %cst_74 = arith.constant 0.000000e+00 : f32
      %93 = vector.broadcast %cst_74 : f32 to vector<1x32xf32>
      %c0_75 = arith.constant 0 : index
      %c0_76 = arith.constant 0 : index
      %94 = vector.load %arg14[%c0_75, %c0_76] : memref<1x32xf32, #tpu.memory_space<vmem>>, vector<1x32xf32>
      tpu.vector_store %arg14[%c0_75, %c0_76], %93 {strides = array<i32>} : memref<1x32xf32, #tpu.memory_space<vmem>>, vector<1x32xf32>,
      %cst_77 = arith.constant 0.000000e+00 : f32
      %95 = vector.broadcast %cst_77 : f32 to vector<1x32xf32>
      %c0_78 = arith.constant 0 : index
      %c0_79 = arith.constant 0 : index
      %96 = vector.load %arg15[%c0_78, %c0_79] : memref<1x32xf32, #tpu.memory_space<vmem>>, vector<1x32xf32>
      tpu.vector_store %arg15[%c0_78, %c0_79], %95 {strides = array<i32>} : memref<1x32xf32, #tpu.memory_space<vmem>>, vector<1x32xf32>,
      %cst_80 = arith.constant 0.000000e+00 : f32
      %97 = vector.broadcast %cst_80 : f32 to vector<1x32xf32>
      %c0_81 = arith.constant 0 : index
      %c0_82 = arith.constant 0 : index
      %98 = vector.load %arg16[%c0_81, %c0_82] : memref<1x32xf32, #tpu.memory_space<vmem>>, vector<1x32xf32>
      tpu.vector_store %arg16[%c0_81, %c0_82], %97 {strides = array<i32>} : memref<1x32xf32, #tpu.memory_space<vmem>>, vector<1x32xf32>,
      %cst_83 = arith.constant 0.000000e+00 : f32
      %99 = vector.broadcast %cst_83 : f32 to vector<1x1xf32>
      %c0_84 = arith.constant 0 : index
      %c0_85 = arith.constant 0 : index
      %100 = vector.load %arg17[%c0_84, %c0_85] : memref<1x1xf32, #tpu.memory_space<vmem>>, vector<1x1xf32>
      tpu.vector_store %arg17[%c0_84, %c0_85], %99 {strides = array<i32>} : memref<1x1xf32, #tpu.memory_space<vmem>>, vector<1x1xf32>,
      %cst_86 = arith.constant 0.000000e+00 : f32
      %101 = vector.broadcast %cst_86 : f32 to vector<1x1xf32>
      %c0_87 = arith.constant 0 : index
      %c0_88 = arith.constant 0 : index
      %102 = vector.load %arg18[%c0_87, %c0_88] : memref<1x1xf32, #tpu.memory_space<vmem>>, vector<1x1xf32>
      tpu.vector_store %arg18[%c0_87, %c0_88], %101 {strides = array<i32>} : memref<1x1xf32, #tpu.memory_space<vmem>>, vector<1x1xf32>,
    } else {
    }
    %c0 = arith.constant 0 : index
    %c0_1 = arith.constant 0 : index
    %3 = vector.load %arg1[%c0, %c0_1] : memref<8x32xf32, #tpu.memory_space<vmem>>, vector<8x32xf32>
    %c0_2 = arith.constant 0 : index
    %c0_3 = arith.constant 0 : index
    %4 = vector.load %arg2[%c0_2, %c0_3] : memref<8x32xf32, #tpu.memory_space<vmem>>, vector<8x32xf32>
    %c0_4 = arith.constant 0 : index
    %c0_5 = arith.constant 0 : index
    %5 = vector.load %arg3[%c0_4, %c0_5] : memref<32x16xf32, #tpu.memory_space<vmem>>, vector<32x16xf32>
    %cst = arith.constant dense<0.000000e+00> : vector<8x16xf32>
    %6 = tpu.matmul %3, %5, %cst {dimension_numbers = #tpu.dot_dimension_numbers<[1], [0], [0], [1], [0, 0, 1, 1], [], []>, precision = #tpu.contract_precision<fp32>} : vector<8x32xf32>, vector<32x16xf32>, vector<8x16xf32> -> vector<8x16xf32>
    %c0_6 = arith.constant 0 : index
    %c0_7 = arith.constant 0 : index
    %7 = vector.load %arg4[%c0_6, %c0_7] : memref<1x16xf32, #tpu.memory_space<vmem>>, vector<1x16xf32>
    %8 = vector.broadcast %7 : vector<1x16xf32> to vector<8x16xf32>
    %9 = arith.addf %6, %8 : vector<8x16xf32>
    %cst_8 = arith.constant 0.000000e+00 : f32
    %10 = vector.broadcast %cst_8 : f32 to vector<8x16xf32>
    %11 = arith.maximumf %9, %10 : vector<8x16xf32>
    %c0_9 = arith.constant 0 : index
    %c0_10 = arith.constant 0 : index
    %12 = vector.load %arg7[%c0_9, %c0_10] : memref<32x16xf32, #tpu.memory_space<vmem>>, vector<32x16xf32>
    %cst_11 = arith.constant dense<0.000000e+00> : vector<8x16xf32>
    %13 = tpu.matmul %3, %12, %cst_11 {dimension_numbers = #tpu.dot_dimension_numbers<[1], [0], [0], [1], [0, 0, 1, 1], [], []>, precision = #tpu.contract_precision<fp32>} : vector<8x32xf32>, vector<32x16xf32>, vector<8x16xf32> -> vector<8x16xf32>
    %c0_12 = arith.constant 0 : index
    %c0_13 = arith.constant 0 : index
    %14 = vector.load %arg8[%c0_12, %c0_13] : memref<1x16xf32, #tpu.memory_space<vmem>>, vector<1x16xf32>
    %15 = vector.broadcast %14 : vector<1x16xf32> to vector<8x16xf32>
    %16 = arith.addf %13, %15 : vector<8x16xf32>
    %cst_14 = arith.constant 0.000000e+00 : f32
    %17 = vector.broadcast %cst_14 : f32 to vector<8x16xf32>
    %18 = arith.maximumf %16, %17 : vector<8x16xf32>
    %c0_15 = arith.constant 0 : index
    %c0_16 = arith.constant 0 : index
    %19 = vector.load %arg5[%c0_15, %c0_16] : memref<16x32xf32, #tpu.memory_space<vmem>>, vector<16x32xf32>
    %cst_17 = arith.constant dense<0.000000e+00> : vector<8x32xf32>
    %20 = tpu.matmul %11, %19, %cst_17 {dimension_numbers = #tpu.dot_dimension_numbers<[1], [0], [0], [1], [0, 0, 1, 1], [], []>, precision = #tpu.contract_precision<fp32>} : vector<8x16xf32>, vector<16x32xf32>, vector<8x32xf32> -> vector<8x32xf32>
    %c0_18 = arith.constant 0 : index
    %c0_19 = arith.constant 0 : index
    %21 = vector.load %arg6[%c0_18, %c0_19] : memref<1x32xf32, #tpu.memory_space<vmem>>, vector<1x32xf32>
    %22 = vector.broadcast %21 : vector<1x32xf32> to vector<8x32xf32>
    %23 = arith.addf %20, %22 : vector<8x32xf32>
    %c0_20 = arith.constant 0 : index
    %c0_21 = arith.constant 0 : index
    %24 = vector.load %arg9[%c0_20, %c0_21] : memref<16x32xf32, #tpu.memory_space<vmem>>, vector<16x32xf32>
    %cst_22 = arith.constant dense<0.000000e+00> : vector<8x32xf32>
    %25 = tpu.matmul %18, %24, %cst_22 {dimension_numbers = #tpu.dot_dimension_numbers<[1], [0], [0], [1], [0, 0, 1, 1], [], []>, precision = #tpu.contract_precision<fp32>} : vector<8x16xf32>, vector<16x32xf32>, vector<8x32xf32> -> vector<8x32xf32>
    %c0_23 = arith.constant 0 : index
    %c0_24 = arith.constant 0 : index
    %26 = vector.load %arg10[%c0_23, %c0_24] : memref<1x32xf32, #tpu.memory_space<vmem>>, vector<1x32xf32>
    %27 = vector.broadcast %26 : vector<1x32xf32> to vector<8x32xf32>
    %28 = arith.addf %25, %27 : vector<8x32xf32>
    %29 = math.tanh %28 : vector<8x32xf32>
    %cst_25 = arith.constant 0.000000e+00 : f32
    %30 = vector.broadcast %cst_25 : f32 to vector<8x32xf32>
    %31 = arith.subf %30, %29 : vector<8x32xf32>
    %32 = math.exp %31 : vector<8x32xf32>
    %cst_26 = arith.constant 5.000000e-01 : f32
    %33 = vector.broadcast %cst_26 : f32 to vector<8x32xf32>
    %34 = arith.mulf %33, %32 : vector<8x32xf32>
    %35 = arith.subf %23, %4 : vector<8x32xf32>
    %36 = arith.mulf %35, %35 : vector<8x32xf32>
    %cst_27 = arith.constant 0.000000e+00 : f32
    %37 = vector.broadcast %cst_27 : f32 to vector<8x32xf32>
    %38 = arith.subf %37, %36 : vector<8x32xf32>
    %39 = arith.mulf %38, %34 : vector<8x32xf32>
    %cst_28 = arith.constant 5.000000e-01 : f32
    %40 = vector.broadcast %cst_28 : f32 to vector<8x32xf32>
    %41 = arith.mulf %40, %29 : vector<8x32xf32>
    %42 = arith.subf %39, %41 : vector<8x32xf32>
    %cst_29 = arith.constant dense<0.000000e+00> : vector<8xf32>
    %43 = vector.multi_reduction <add>, %42, %cst_29 [1] : vector<8x32xf32> to vector<8xf32>
    %44 = vector.shape_cast %43 : vector<8xf32> to vector<8x1xf32>
    %c0_30 = arith.constant 0 : index
    %c0_31 = arith.constant 0 : index
    %45 = vector.load %arg12[%c0_30, %c0_31] : memref<1x32xf32, #tpu.memory_space<vmem>>, vector<1x32xf32>
    %cst_32 = arith.constant dense<0.000000e+00> : vector<32xf32>
    %46 = vector.multi_reduction <add>, %4, %cst_32 [0] : vector<8x32xf32> to vector<32xf32>
    %47 = vector.shape_cast %46 : vector<32xf32> to vector<1x32xf32>
    %48 = arith.addf %45, %47 : vector<1x32xf32>
    %c0_33 = arith.constant 0 : index
    %c0_34 = arith.constant 0 : index
    %49 = vector.load %arg12[%c0_33, %c0_34] : memref<1x32xf32, #tpu.memory_space<vmem>>, vector<1x32xf32>
    tpu.vector_store %arg12[%c0_33, %c0_34], %48 {strides = array<i32>} : memref<1x32xf32, #tpu.memory_space<vmem>>, vector<1x32xf32>,
    %c0_35 = arith.constant 0 : index
    %c0_36 = arith.constant 0 : index
    %50 = vector.load %arg13[%c0_35, %c0_36] : memref<1x32xf32, #tpu.memory_space<vmem>>, vector<1x32xf32>
    %51 = arith.mulf %4, %4 : vector<8x32xf32>
    %cst_37 = arith.constant dense<0.000000e+00> : vector<32xf32>
    %52 = vector.multi_reduction <add>, %51, %cst_37 [0] : vector<8x32xf32> to vector<32xf32>
    %53 = vector.shape_cast %52 : vector<32xf32> to vector<1x32xf32>
    %54 = arith.addf %50, %53 : vector<1x32xf32>
    %c0_38 = arith.constant 0 : index
    %c0_39 = arith.constant 0 : index
    %55 = vector.load %arg13[%c0_38, %c0_39] : memref<1x32xf32, #tpu.memory_space<vmem>>, vector<1x32xf32>
    tpu.vector_store %arg13[%c0_38, %c0_39], %54 {strides = array<i32>} : memref<1x32xf32, #tpu.memory_space<vmem>>, vector<1x32xf32>,
    %c0_40 = arith.constant 0 : index
    %c0_41 = arith.constant 0 : index
    %56 = vector.load %arg14[%c0_40, %c0_41] : memref<1x32xf32, #tpu.memory_space<vmem>>, vector<1x32xf32>
    %cst_42 = arith.constant dense<0.000000e+00> : vector<32xf32>
    %57 = vector.multi_reduction <add>, %34, %cst_42 [0] : vector<8x32xf32> to vector<32xf32>
    %58 = vector.shape_cast %57 : vector<32xf32> to vector<1x32xf32>
    %59 = arith.addf %56, %58 : vector<1x32xf32>
    %c0_43 = arith.constant 0 : index
    %c0_44 = arith.constant 0 : index
    %60 = vector.load %arg14[%c0_43, %c0_44] : memref<1x32xf32, #tpu.memory_space<vmem>>, vector<1x32xf32>
    tpu.vector_store %arg14[%c0_43, %c0_44], %59 {strides = array<i32>} : memref<1x32xf32, #tpu.memory_space<vmem>>, vector<1x32xf32>,
    %c0_45 = arith.constant 0 : index
    %c0_46 = arith.constant 0 : index
    %61 = vector.load %arg15[%c0_45, %c0_46] : memref<1x32xf32, #tpu.memory_space<vmem>>, vector<1x32xf32>
    %62 = arith.mulf %23, %32 : vector<8x32xf32>
    %cst_47 = arith.constant dense<0.000000e+00> : vector<32xf32>
    %63 = vector.multi_reduction <add>, %62, %cst_47 [0] : vector<8x32xf32> to vector<32xf32>
    %64 = vector.shape_cast %63 : vector<32xf32> to vector<1x32xf32>
    %65 = arith.addf %61, %64 : vector<1x32xf32>
    %c0_48 = arith.constant 0 : index
    %c0_49 = arith.constant 0 : index
    %66 = vector.load %arg15[%c0_48, %c0_49] : memref<1x32xf32, #tpu.memory_space<vmem>>, vector<1x32xf32>
    tpu.vector_store %arg15[%c0_48, %c0_49], %65 {strides = array<i32>} : memref<1x32xf32, #tpu.memory_space<vmem>>, vector<1x32xf32>,
    %c0_50 = arith.constant 0 : index
    %c0_51 = arith.constant 0 : index
    %67 = vector.load %arg16[%c0_50, %c0_51] : memref<1x32xf32, #tpu.memory_space<vmem>>, vector<1x32xf32>
    %68 = arith.mulf %23, %23 : vector<8x32xf32>
    %69 = arith.mulf %68, %34 : vector<8x32xf32>
    %cst_52 = arith.constant dense<0.000000e+00> : vector<32xf32>
    %70 = vector.multi_reduction <add>, %69, %cst_52 [0] : vector<8x32xf32> to vector<32xf32>
    %71 = vector.shape_cast %70 : vector<32xf32> to vector<1x32xf32>
    %72 = arith.addf %67, %71 : vector<1x32xf32>
    %c0_53 = arith.constant 0 : index
    %c0_54 = arith.constant 0 : index
    %73 = vector.load %arg16[%c0_53, %c0_54] : memref<1x32xf32, #tpu.memory_space<vmem>>, vector<1x32xf32>
    tpu.vector_store %arg16[%c0_53, %c0_54], %72 {strides = array<i32>} : memref<1x32xf32, #tpu.memory_space<vmem>>, vector<1x32xf32>,
    %c0_55 = arith.constant 0 : index
    %c0_56 = arith.constant 0 : index
    %74 = vector.load %arg17[%c0_55, %c0_56] : memref<1x1xf32, #tpu.memory_space<vmem>>, vector<1x1xf32>
    %cst_57 = arith.constant dense<0.000000e+00> : vector<1xf32>
    %75 = vector.multi_reduction <add>, %44, %cst_57 [0] : vector<8x1xf32> to vector<1xf32>
    %76 = vector.shape_cast %75 : vector<1xf32> to vector<1x1xf32>
    %77 = arith.addf %74, %76 : vector<1x1xf32>
    %c0_58 = arith.constant 0 : index
    %c0_59 = arith.constant 0 : index
    %78 = vector.load %arg17[%c0_58, %c0_59] : memref<1x1xf32, #tpu.memory_space<vmem>>, vector<1x1xf32>
    tpu.vector_store %arg17[%c0_58, %c0_59], %77 {strides = array<i32>} : memref<1x1xf32, #tpu.memory_space<vmem>>, vector<1x1xf32>,
    %c0_60 = arith.constant 0 : index
    %c0_61 = arith.constant 0 : index
    %79 = vector.load %arg18[%c0_60, %c0_61] : memref<1x1xf32, #tpu.memory_space<vmem>>, vector<1x1xf32>
    %cst_62 = arith.constant dense<0.000000e+00> : vector<8xf32>
    %80 = vector.multi_reduction <add>, %29, %cst_62 [1] : vector<8x32xf32> to vector<8xf32>
    %81 = vector.shape_cast %80 : vector<8xf32> to vector<8x1xf32>
    %cst_63 = arith.constant dense<0.000000e+00> : vector<1xf32>
    %82 = vector.multi_reduction <add>, %81, %cst_63 [0] : vector<8x1xf32> to vector<1xf32>
    %83 = vector.shape_cast %82 : vector<1xf32> to vector<1x1xf32>
    %84 = arith.addf %79, %83 : vector<1x1xf32>
    %c0_64 = arith.constant 0 : index
    %c0_65 = arith.constant 0 : index
    %85 = vector.load %arg18[%c0_64, %c0_65] : memref<1x1xf32, #tpu.memory_space<vmem>>, vector<1x1xf32>
    tpu.vector_store %arg18[%c0_64, %c0_65], %84 {strides = array<i32>} : memref<1x1xf32, #tpu.memory_space<vmem>>, vector<1x1xf32>,
    %c0_i32_66 = arith.constant 0 : i32
    %86 = arith.cmpi eq, %arg0, %c0_i32_66 : i32
    %87 = arith.extui %86 : i1 to i32
    %c0_i32_67 = arith.constant 0 : i32
    %88 = arith.cmpi ne, %87, %c0_i32_67 : i32
    scf.if %88 {
      %c0_68 = arith.constant 0 : index
      %c0_69 = arith.constant 0 : index
      %89 = vector.load %arg15[%c0_68, %c0_69] : memref<1x32xf32, #tpu.memory_space<vmem>>, vector<1x32xf32>
      %c0_70 = arith.constant 0 : index
      %c0_71 = arith.constant 0 : index
      %90 = vector.load %arg12[%c0_70, %c0_71] : memref<1x32xf32, #tpu.memory_space<vmem>>, vector<1x32xf32>
      %91 = arith.mulf %89, %90 : vector<1x32xf32>
      %c0_72 = arith.constant 0 : index
      %c0_73 = arith.constant 0 : index
      %92 = vector.load %arg14[%c0_72, %c0_73] : memref<1x32xf32, #tpu.memory_space<vmem>>, vector<1x32xf32>
      %c0_74 = arith.constant 0 : index
      %c0_75 = arith.constant 0 : index
      %93 = vector.load %arg13[%c0_74, %c0_75] : memref<1x32xf32, #tpu.memory_space<vmem>>, vector<1x32xf32>
      %94 = arith.mulf %92, %93 : vector<1x32xf32>
      %95 = arith.subf %91, %94 : vector<1x32xf32>
      %c0_76 = arith.constant 0 : index
      %c0_77 = arith.constant 0 : index
      %96 = vector.load %arg16[%c0_76, %c0_77] : memref<1x32xf32, #tpu.memory_space<vmem>>, vector<1x32xf32>
      %cst_78 = arith.constant 8.000000e+00 : f32
      %97 = vector.broadcast %cst_78 : f32 to vector<1x32xf32>
      %98 = arith.mulf %97, %96 : vector<1x32xf32>
      %99 = arith.subf %95, %98 : vector<1x32xf32>
      %cst_79 = arith.constant dense<0.000000e+00> : vector<1xf32>
      %100 = vector.multi_reduction <add>, %99, %cst_79 [1] : vector<1x32xf32> to vector<1xf32>
      %101 = vector.shape_cast %100 : vector<1xf32> to vector<1x1xf32>
      %cst_80 = arith.constant 5.000000e-01 : f32
      %cst_81 = arith.constant 8.000000e+00 : f32
      %102 = arith.mulf %cst_80, %cst_81 : f32
      %c0_82 = arith.constant 0 : index
      %c0_83 = arith.constant 0 : index
      %103 = vector.load %arg18[%c0_82, %c0_83] : memref<1x1xf32, #tpu.memory_space<vmem>>, vector<1x1xf32>
      %104 = vector.broadcast %102 : f32 to vector<1x1xf32>
      %105 = arith.mulf %104, %103 : vector<1x1xf32>
      %106 = arith.subf %101, %105 : vector<1x1xf32>
      %c0_84 = arith.constant 0 : index
      %c0_85 = arith.constant 0 : index
      %107 = vector.load %arg17[%c0_84, %c0_85] : memref<1x1xf32, #tpu.memory_space<vmem>>, vector<1x1xf32>
      %cst_86 = arith.constant 8.000000e+00 : f32
      %108 = vector.broadcast %cst_86 : f32 to vector<1x1xf32>
      %109 = arith.divf %107, %108 : vector<1x1xf32>
      %cst_87 = arith.constant 8.000000e+00 : f32
      %cst_88 = arith.constant 8.000000e+00 : f32
      %110 = arith.mulf %cst_87, %cst_88 : f32
      %111 = vector.broadcast %110 : f32 to vector<1x1xf32>
      %112 = arith.divf %106, %111 : vector<1x1xf32>
      %113 = arith.subf %109, %112 : vector<1x1xf32>
      %cst_89 = arith.constant 2.94450686E-10 : f32
      %114 = vector.broadcast %cst_89 : f32 to vector<1x1xf32>
      %115 = arith.subf %113, %114 : vector<1x1xf32>
      %c0_90 = arith.constant 0 : index
      %c0_91 = arith.constant 0 : index
      %116 = vector.load %arg11[%c0_90, %c0_91] : memref<1x1xf32, #tpu.memory_space<vmem>>, vector<1x1xf32>
      tpu.vector_store %arg11[%c0_90, %c0_91], %115 {strides = array<i32>} : memref<1x1xf32, #tpu.memory_space<vmem>>, vector<1x1xf32>,
    } else {
    }
    return
  }
  func.func @transform_0(%arg0: i32) -> (i32, i32) {
    %c0_i32 = arith.constant 0 : i32
    %c0_i32_0 = arith.constant 0 : i32
    return %arg0, %c0_i32 : i32, i32
  }
  func.func @transform_1(%arg0: i32) -> (i32, i32) {
    %c0_i32 = arith.constant 0 : i32
    %c0_i32_0 = arith.constant 0 : i32
    return %arg0, %c0_i32 : i32, i32
  }
  func.func @transform_2(%arg0: i32) -> (i32, i32) {
    %c0_i32 = arith.constant 0 : i32
    %c0_i32_0 = arith.constant 0 : i32
    %c0_i32_1 = arith.constant 0 : i32
    return %c0_i32, %c0_i32_0 : i32, i32
  }
  func.func @transform_3(%arg0: i32) -> (i32, i32) {
    %c0_i32 = arith.constant 0 : i32
    %c0_i32_0 = arith.constant 0 : i32
    %c0_i32_1 = arith.constant 0 : i32
    return %c0_i32, %c0_i32_0 : i32, i32
  }
  func.func @transform_4(%arg0: i32) -> (i32, i32) {
    %c0_i32 = arith.constant 0 : i32
    %c0_i32_0 = arith.constant 0 : i32
    %c0_i32_1 = arith.constant 0 : i32
    return %c0_i32, %c0_i32_0 : i32, i32
  }
  func.func @transform_5(%arg0: i32) -> (i32, i32) {
    %c0_i32 = arith.constant 0 : i32
    %c0_i32_0 = arith.constant 0 : i32
    %c0_i32_1 = arith.constant 0 : i32
    return %c0_i32, %c0_i32_0 : i32, i32
  }
  func.func @transform_6(%arg0: i32) -> (i32, i32) {
    %c0_i32 = arith.constant 0 : i32
    %c0_i32_0 = arith.constant 0 : i32
    %c0_i32_1 = arith.constant 0 : i32
    return %c0_i32, %c0_i32_0 : i32, i32
  }
  func.func @transform_7(%arg0: i32) -> (i32, i32) {
    %c0_i32 = arith.constant 0 : i32
    %c0_i32_0 = arith.constant 0 : i32
    %c0_i32_1 = arith.constant 0 : i32
    return %c0_i32, %c0_i32_0 : i32, i32
  }
  func.func @transform_8(%arg0: i32) -> (i32, i32) {
    %c0_i32 = arith.constant 0 : i32
    %c0_i32_0 = arith.constant 0 : i32
    %c0_i32_1 = arith.constant 0 : i32
    return %c0_i32, %c0_i32_0 : i32, i32
  }
  func.func @transform_9(%arg0: i32) -> (i32, i32) {
    %c0_i32 = arith.constant 0 : i32
    %c0_i32_0 = arith.constant 0 : i32
    %c0_i32_1 = arith.constant 0 : i32
    return %c0_i32, %c0_i32_0 : i32, i32
  }
  func.func @transform_10(%arg0: i32) -> (i32, i32) {
    %c0_i32 = arith.constant 0 : i32
    %c0_i32_0 = arith.constant 0 : i32
    %c0_i32_1 = arith.constant 0 : i32
    return %c0_i32, %c0_i32_0 : i32, i32
  }
}

</mosaic_0001>

<llo_original>
// kernel: tpu_custom_call.1
$region0: #{tpu_custom_call.1}
  #allocation0 [shape = 'u32[]', space=smem, size = 0x4, offset = 0x4, fixed_abs, tag = 'smem constant byte address 0x4 - core index']
  #allocation1 [shape = 'u32[144,128]{1,0:T(1,128)}', space=vmem, size = 0x12000, scoped, tag = 'internal scratch']
  #allocation2 [shape = 'f32[1,32]{1,0:T(1,128)}', space=vmem, size = 0x200, scoped, tag = 'scratch operand']
  #allocation3 [shape = 'f32[1,32]{1,0:T(1,128)}', space=vmem, size = 0x200, scoped, tag = 'scratch operand']
  #allocation4 [shape = 'f32[1,32]{1,0:T(1,128)}', space=vmem, size = 0x200, scoped, tag = 'scratch operand']
  #allocation5 [shape = 'f32[1,32]{1,0:T(1,128)}', space=vmem, size = 0x200, scoped, tag = 'scratch operand']
  #allocation6 [shape = 'f32[1,32]{1,0:T(1,128)}', space=vmem, size = 0x200, scoped, tag = 'scratch operand']
  #allocation7 [shape = 'f32[1,1]{1,0:T(1,128)}', space=vmem, size = 0x200, scoped, tag = 'scratch operand']
  #allocation8 [shape = 'f32[1,1]{1,0:T(1,128)}', space=vmem, size = 0x200, scoped, tag = 'scratch operand']
  %s0 = inlined_call_operand.vmem [shape: f32[8,32], index: 0, kind: input, shape index: {}]
  %s1 = inlined_call_operand.vmem [shape: f32[8,32], index: 1, kind: input, shape index: {}]
  %s2 = inlined_call_operand.vmem [shape: f32[32,16], index: 2, kind: input, shape index: {}]
  %s3 = inlined_call_operand.vmem [shape: f32[1,16], index: 3, kind: input, shape index: {}]
  %s4 = inlined_call_operand.vmem [shape: f32[16,32], index: 4, kind: input, shape index: {}]
  %s5 = inlined_call_operand.vmem [shape: f32[1,32], index: 5, kind: input, shape index: {}]
  %s6 = inlined_call_operand.vmem [shape: f32[32,16], index: 6, kind: input, shape index: {}]
  %s7 = inlined_call_operand.vmem [shape: f32[1,16], index: 7, kind: input, shape index: {}]
  %s8 = inlined_call_operand.vmem [shape: f32[16,32], index: 8, kind: input, shape index: {}]
  %s9 = inlined_call_operand.vmem [shape: f32[1,32], index: 9, kind: input, shape index: {}]
  %s10 = inlined_call_operand.hbm [shape: f32[1,1], index: 10, kind: output, shape index: {}]
  %s11 = sld [smem:[#allocation0]]
  $region58: #{tpu_custom_call.1} parent=0
    _
  %s13 = ssub.s32 1, %s11
  %s14 = scalar_select 0, %s13, %s11
  $region1: #{tpu_custom_call.1} parent=0
    #allocation9 [shape = 'u8[512]{0}', space=vmem, size = 0x400, scoped, tag = 'output window, operand 0, single buffered']
    #allocation10 [shape = 's32[1]{0}', space=sflag, size = 0x4, scoped, tag = 'scoped memory for tpu_custom_call.1']
    %15 = vsyncpa [#allocation10], 0
    // Predicated region
    $region2: #{tpu_custom_call.1} parent=1 // pred_check
      _
    $region3: #{tpu_custom_call.1} parent=1 // pred_check_branch
      %17 = sbr.rel (0) target = $region5
    $region4: #{tpu_custom_call.1} parent=1 // pred_region
      _
    $region5: #{tpu_custom_call.1} parent=1 // pred_fallthru
      _
    // Predicated region
    $region6: #{tpu_custom_call.1} parent=1 // pred_check
      _
    $region7: #{tpu_custom_call.1} parent=1 // pred_check_branch
      %19 = sbr.rel (0) target = $region9
    $region8: #{tpu_custom_call.1} parent=1 // pred_region
      _
    $region9: #{tpu_custom_call.1} parent=1 // pred_fallthru
      _
    // Predicated region
    $region10: #{tpu_custom_call.1} parent=1 // pred_check
      _
    $region11: #{tpu_custom_call.1} parent=1 // pred_check_branch
      %21 = sbr.rel (0) target = $region13
    $region12: #{tpu_custom_call.1} parent=1 // pred_region
      _
    $region13: #{tpu_custom_call.1} parent=1 // pred_fallthru
      _
    // Predicated region
    $region14: #{tpu_custom_call.1} parent=1 // pred_check
      _
    $region15: #{tpu_custom_call.1} parent=1 // pred_check_branch
      %23 = sbr.rel (0) target = $region17
    $region16: #{tpu_custom_call.1} parent=1 // pred_region
      _
    $region17: #{tpu_custom_call.1} parent=1 // pred_fallthru
      _
    // Predicated region
    $region18: #{tpu_custom_call.1} parent=1 // pred_check
      _
    $region19: #{tpu_custom_call.1} parent=1 // pred_check_branch
      %25 = sbr.rel (0) target = $region21
    $region20: #{tpu_custom_call.1} parent=1 // pred_region
      _
    $region21: #{tpu_custom_call.1} parent=1 // pred_fallthru
      _
    // Predicated region
    $region22: #{tpu_custom_call.1} parent=1 // pred_check
      _
    $region23: #{tpu_custom_call.1} parent=1 // pred_check_branch
      %27 = sbr.rel (0) target = $region25
    $region24: #{tpu_custom_call.1} parent=1 // pred_region
      _
    $region25: #{tpu_custom_call.1} parent=1 // pred_fallthru
      _
    // Predicated region
    $region26: #{tpu_custom_call.1} parent=1 // pred_check
      _
    $region27: #{tpu_custom_call.1} parent=1 // pred_check_branch
      %29 = sbr.rel (0) target = $region29
    $region28: #{tpu_custom_call.1} parent=1 // pred_region
      _
    $region29: #{tpu_custom_call.1} parent=1 // pred_fallthru
      _
    // Predicated region
    $region30: #{tpu_custom_call.1} parent=1 // pred_check
      _
    $region31: #{tpu_custom_call.1} parent=1 // pred_check_branch
      %31 = sbr.rel (0) target = $region33
    $region32: #{tpu_custom_call.1} parent=1 // pred_region
      _
    $region33: #{tpu_custom_call.1} parent=1 // pred_fallthru
      _
    // Predicated region
    $region34: #{tpu_custom_call.1} parent=1 // pred_check
      _
    $region35: #{tpu_custom_call.1} parent=1 // pred_check_branch
      %33 = sbr.rel (0) target = $region37
    $region36: #{tpu_custom_call.1} parent=1 // pred_region
      _
    $region37: #{tpu_custom_call.1} parent=1 // pred_fallthru
      _
    // Predicated region
    $region38: #{tpu_custom_call.1} parent=1 // pred_check
      _
    $region39: #{tpu_custom_call.1} parent=1 // pred_check_branch
      %35 = sbr.rel (0) target = $region41
    $region40: #{tpu_custom_call.1} parent=1 // pred_region
      _
    $region41: #{tpu_custom_call.1} parent=1 // pred_fallthru
      _
    %p36 = scmp.eq.s32.totalorder 0, 0
    // Predicated region
    $region42: #{tpu_custom_call.1} parent=1 // pred_check
      %p37 = pneg %p36
    $region43: #{tpu_custom_call.1} parent=1 // pred_check_branch
      %39 = sbr.rel (%p37) target = $region45
    $region44: #{tpu_custom_call.1} parent=1 // pred_region
      %vm40 = vcmask 253952
      %41 = vst.msk [vmem:[#allocation2] sm:$0x1] %vm40, 0.0
      %42 = vst.msk [vmem:[#allocation3] sm:$0x1] %vm40, 0.0
      %43 = vst.msk [vmem:[#allocation4] sm:$0x1] %vm40, 0.0
      %44 = vst.msk [vmem:[#allocation5] sm:$0x1] %vm40, 0.0
      %45 = vst.msk [vmem:[#allocation6] sm:$0x1] %vm40, 0.0
      %vm46 = vcmask 0
      %47 = vst.msk [vmem:[#allocation7] sm:$0x1] %vm46, 0.0
      %48 = vst.msk [vmem:[#allocation8] sm:$0x1] %vm46, 0.0
    $region45: #{tpu_custom_call.1} parent=1 // pred_fallthru
      _
    %v49 = vld [vmem:[%s0] sm:$0xff]
    %v50 = vld [vmem:[%s1] sm:$0xff]
    %v51 = vld [vmem:[%s2] sm:$0xff]
    %v52 = vld [vmem:[%s2 + $0x8] sm:$0xff]
    %v53 = vld [vmem:[%s2 + $0x10] sm:$0xff]
    %v54 = vld [vmem:[%s2 + $0x18] sm:$0xff]
    %v55 = vld [vmem:[%s3] sm:$0x1]
    %v57 = vlaneseq
    %v58 = vshrl.u32 %v57, 7
    %v59 = vsub.s32 0, %v58
    %v60 = vrot.slane %v55, %v59
    %vm62 = vcmask 261120
    %v64 = vsel %vm62, %v49, 0
    %66 = vmatprep.subr.mxu0 0.0
    %v67 = vand.u32 %v51, 4294901760
    %68 = vmatpush1.msra.mxu0 %v67
    %69 = vmatprep.subr.mxu0 0.0
    %v70 = vand.u32 %v52, 4294901760
    %71 = vmatpush1.msra.mxu0 %v70
    %72 = vmatprep.subr.mxu0 0.0
    %v73 = vand.u32 %v53, 4294901760
    %74 = vmatpush1.msra.mxu0 %v73
    %75 = vmatprep.subr.mxu0 0.0
    %v76 = vand.u32 %v54, 4294901760
    %77 = vmatpush1.msra.mxu0 %v76
    %78 = vmatprep.subr.mxu0 0.0
    %79 = vmatpush1.msra.mxu0 0.0
    %80 = vmatprep.subr.mxu0 0.0
    %81 = vmatpush1.msra.mxu0 0.0
    %82 = vmatprep.subr.mxu0 0.0
    %83 = vmatpush1.msra.mxu0 0.0
    %84 = vmatprep.subr.mxu0 0.0
    %85 = vmatpush1.msra.mxu0 0.0
    %86 = vmatprep.subr.mxu0 0.0
    %87 = vmatpush1.msra.mxu0 0.0
    %88 = vmatprep.subr.mxu0 0.0
    %89 = vmatpush1.msra.mxu0 0.0
    %90 = vmatprep.subr.mxu0 0.0
    %91 = vmatpush1.msra.mxu0 0.0
    %92 = vmatprep.subr.mxu0 0.0
    %93 = vmatpush1.msra.mxu0 0.0
    %94 = vmatprep.subr.mxu0 0.0
    %95 = vmatpush1.msra.mxu0 0.0
    %96 = vmatprep.subr.mxu0 0.0
    %97 = vmatpush1.msra.mxu0 0.0
    %98 = vmatprep.subr.mxu0 0.0
    %99 = vmatpush1.msra.mxu0 0.0
    %100 = vmatprep.subr.mxu0 0.0
    %101 = vmatpush1.msra.mxu0 0.0
    %102 = vmatprep.subr.mxu0 0.0
    %103 = vmatpush1.msra.mxu0 0.0
    %104 = vmatprep.subr.mxu0 0.0
    %105 = vmatpush1.msra.mxu0 0.0
    %106 = vmatprep.subr.mxu0 0.0
    %107 = vmatpush1.msra.mxu0 0.0
    %108 = vmatprep.subr.mxu0 0.0
    %109 = vmatpush1.msra.mxu0 0.0
    %110 = vmatprep.subr.mxu0 0.0
    %111 = vmatpush1.msra.mxu0 0.0
    %112 = vmatprep.subr.mxu0 0.0
    %113 = vmatpush1.msra.mxu0 0.0
    %114 = vmatprep.subr.mxu0 0.0
    %115 = vmatpush1.msra.mxu0 0.0
    %116 = vmatprep.subr.mxu0 0.0
    %117 = vmatpush1.msra.mxu0 0.0
    %118 = vmatprep.subr.mxu0 0.0
    %119 = vmatpush1.msra.mxu0 0.0
    %120 = vmatprep.subr.mxu0 0.0
    %121 = vmatpush1.msra.mxu0 0.0
    %122 = vmatprep.subr.mxu0 0.0
    %123 = vmatpush1.msra.mxu0 0.0
    %124 = vmatprep.subr.mxu0 0.0
    %125 = vmatpush1.msra.mxu0 0.0
    %126 = vmatprep.subr.mxu0 0.0
    %127 = vmatpush1.msra.mxu0 0.0
    %128 = vmatprep.subr.mxu0 0.0
    %129 = vmatpush1.msra.mxu0 0.0
    %130 = vmatprep.subr.mxu0 0.0
    %131 = vmatpush1.msra.mxu0 0.0
    %132 = vmatprep.subr.mxu0 0.0
    %133 = vmatpush1.msra.mxu0 0.0
    %134 = vmatprep.mubr.f32.mxu0 0.0
    %v135 = vand.u32 %v64, 4294901760
    %v136 = vsub.f32 %v64, %v135
    %v137 = vand.u32 %v136, 4294901760
    %v138 = vsub.f32 %v136, %v137
    %v139 = vand.u32 %v138, 4294901760
    %140 = vmatmul.mubr.f32.gmra.mrb[0].mxu0 %v139
    %v141 = vpop.f32.mrb[0].mxu0
    %v142 = vadd.f32 %v60, %v141
    %v143 = vpop.f32.mrb[0].mxu0
    %144 = vdwg.mxu0
    %145 = vmatprep.subr.mxu0 0.0
    %v146 = vand.u32 %v51, 4294901760
    %v147 = vsub.f32 %v51, %v146
    %v148 = vand.u32 %v147, 4294901760
    %v149 = vsub.f32 %v147, %v148
    %v150 = vand.u32 %v149, 4294901760
    %151 = vmatpush1.msra.mxu0 %v150
    %152 = vmatprep.subr.mxu0 0.0
    %v153 = vand.u32 %v52, 4294901760
    %v154 = vsub.f32 %v52, %v153
    %v155 = vand.u32 %v154, 4294901760
    %v156 = vsub.f32 %v154, %v155
    %v157 = vand.u32 %v156, 4294901760
    %158 = vmatpush1.msra.mxu0 %v157
    %159 = vmatprep.subr.mxu0 0.0
    %v160 = vand.u32 %v53, 4294901760
    %v161 = vsub.f32 %v53, %v160
    %v162 = vand.u32 %v161, 4294901760
    %v163 = vsub.f32 %v161, %v162
    %v164 = vand.u32 %v163, 4294901760
    %165 = vmatpush1.msra.mxu0 %v164
    %166 = vmatprep.subr.mxu0 0.0
    %v167 = vand.u32 %v54, 4294901760
    %v168 = vsub.f32 %v54, %v167
    %v169 = vand.u32 %v168, 4294901760
    %v170 = vsub.f32 %v168, %v169
    %v171 = vand.u32 %v170, 4294901760
    %172 = vmatpush1.msra.mxu0 %v171
    %173 = vmatprep.subr.mxu0 0.0
    %174 = vmatpush1.msra.mxu0 0.0
    %175 = vmatprep.subr.mxu0 0.0
    %176 = vmatpush1.msra.mxu0 0.0
    %177 = vmatprep.subr.mxu0 0.0
    %178 = vmatpush1.msra.mxu0 0.0
    %179 = vmatprep.subr.mxu0 0.0
    %180 = vmatpush1.msra.mxu0 0.0
    %181 = vmatprep.subr.mxu0 0.0
    %182 = vmatpush1.msra.mxu0 0.0
    %183 = vmatprep.subr.mxu0 0.0
    %184 = vmatpush1.msra.mxu0 0.0
    %185 = vmatprep.subr.mxu0 0.0
    %186 = vmatpush1.msra.mxu0 0.0
    %187 = vmatprep.subr.mxu0 0.0
    %188 = vmatpush1.msra.mxu0 0.0
    %189 = vmatprep.subr.mxu0 0.0
    %190 = vmatpush1.msra.mxu0 0.0
    %191 = vmatprep.subr.mxu0 0.0
    %192 = vmatpush1.msra.mxu0 0.0
    %193 = vmatprep.subr.mxu0 0.0
    %194 = vmatpush1.msra.mxu0 0.0
    %195 = vmatprep.subr.mxu0 0.0
    %196 = vmatpush1.msra.mxu0 0.0
    %197 = vmatprep.subr.mxu0 0.0
    %198 = vmatpush1.msra.mxu0 0.0
    %199 = vmatprep.subr.mxu0 0.0
    %200 = vmatpush1.msra.mxu0 0.0
    %201 = vmatprep.subr.mxu0 0.0
    %202 = vmatpush1.msra.mxu0 0.0
    %203 = vmatprep.subr.mxu0 0.0
    %204 = vmatpush1.msra.mxu0 0.0
    %205 = vmatprep.subr.mxu0 0.0
    %206 = vmatpush1.msra.mxu0 0.0
    %207 = vmatprep.subr.mxu0 0.0
    %208 = vmatpush1.msra.mxu0 0.0
    %209 = vmatprep.subr.mxu0 0.0
    %210 = vmatpush1.msra.mxu0 0.0
    %211 = vmatprep.subr.mxu0 0.0
    %212 = vmatpush1.msra.mxu0 0.0
    %213 = vmatprep.subr.mxu0 0.0
    %214 = vmatpush1.msra.mxu0 0.0
    %215 = vmatprep.subr.mxu0 0.0
    %216 = vmatpush1.msra.mxu0 0.0
    %217 = vmatprep.subr.mxu0 0.0
    %218 = vmatpush1.msra.mxu0 0.0
    %219 = vmatprep.subr.mxu0 0.0
    %220 = vmatpush1.msra.mxu0 0.0
    %221 = vmatprep.subr.mxu0 0.0
    %222 = vmatpush1.msra.mxu0 0.0
    %223 = vmatprep.subr.mxu0 0.0
    %224 = vmatpush1.msra.mxu0 0.0
    %225 = vmatprep.subr.mxu0 0.0
    %226 = vmatpush1.msra.mxu0 0.0
    %227 = vmatprep.subr.mxu0 0.0
    %228 = vmatpush1.msra.mxu0 0.0
    %229 = vmatprep.mubr.f32.mxu0 0.0
    %v230 = vand.u32 %v64, 4294901760
    %231 = vmatmul.mubr.f32.gmra.mrb[0].mxu0 %v230
    %v232 = vpop.f32.mrb[0].mxu0
    %v233 = vadd.f32 %v142, %v232
    %v234 = vpop.f32.mrb[0].mxu0
    %235 = vdwg.mxu0
    %236 = vmatprep.subr.mxu0 0.0
    %v237 = vand.u32 %v51, 4294901760
    %v238 = vsub.f32 %v51, %v237
    %239 = vmatpush1.msra.mxu0 %v238
    %240 = vmatprep.subr.mxu0 0.0
    %v241 = vand.u32 %v52, 4294901760
    %v242 = vsub.f32 %v52, %v241
    %243 = vmatpush1.msra.mxu0 %v242
    %244 = vmatprep.subr.mxu0 0.0
    %v245 = vand.u32 %v53, 4294901760
    %v246 = vsub.f32 %v53, %v245
    %247 = vmatpush1.msra.mxu0 %v246
    %248 = vmatprep.subr.mxu0 0.0
    %v249 = vand.u32 %v54, 4294901760
    %v250 = vsub.f32 %v54, %v249
    %251 = vmatpush1.msra.mxu0 %v250
    %252 = vmatprep.subr.mxu0 0.0
    %253 = vmatpush1.msra.mxu0 0.0
    %254 = vmatprep.subr.mxu0 0.0
    %255 = vmatpush1.msra.mxu0 0.0
    %256 = vmatprep.subr.mxu0 0.0
    %257 = vmatpush1.msra.mxu0 0.0
    %258 = vmatprep.subr.mxu0 0.0
    %259 = vmatpush1.msra.mxu0 0.0
    %260 = vmatprep.subr.mxu0 0.0
    %261 = vmatpush1.msra.mxu0 0.0
    %262 = vmatprep.subr.mxu0 0.0
    %263 = vmatpush1.msra.mxu0 0.0
    %264 = vmatprep.subr.mxu0 0.0
    %265 = vmatpush1.msra.mxu0 0.0
    %266 = vmatprep.subr.mxu0 0.0
    %267 = vmatpush1.msra.mxu0 0.0
    %268 = vmatprep.subr.mxu0 0.0
    %269 = vmatpush1.msra.mxu0 0.0
    %270 = vmatprep.subr.mxu0 0.0
    %271 = vmatpush1.msra.mxu0 0.0
    %272 = vmatprep.subr.mxu0 0.0
    %273 = vmatpush1.msra.mxu0 0.0
    %274 = vmatprep.subr.mxu0 0.0
    %275 = vmatpush1.msra.mxu0 0.0
    %276 = vmatprep.subr.mxu0 0.0
    %277 = vmatpush1.msra.mxu0 0.0
    %278 = vmatprep.subr.mxu0 0.0
    %279 = vmatpush1.msra.mxu0 0.0
    %280 = vmatprep.subr.mxu0 0.0
    %281 = vmatpush1.msra.mxu0 0.0
    %282 = vmatprep.subr.mxu0 0.0
    %283 = vmatpush1.msra.mxu0 0.0
    %284 = vmatprep.subr.mxu0 0.0
    %285 = vmatpush1.msra.mxu0 0.0
    %286 = vmatprep.subr.mxu0 0.0
    %287 = vmatpush1.msra.mxu0 0.0
    %288 = vmatprep.subr.mxu0 0.0
    %289 = vmatpush1.msra.mxu0 0.0
    %290 = vmatprep.subr.mxu0 0.0
    %291 = vmatpush1.msra.mxu0 0.0
    %292 = vmatprep.subr.mxu0 0.0
    %293 = vmatpush1.msra.mxu0 0.0
    %294 = vmatprep.subr.mxu0 0.0
    %295 = vmatpush1.msra.mxu0 0.0
    %296 = vmatprep.subr.mxu0 0.0
    %297 = vmatpush1.msra.mxu0 0.0
    %298 = vmatprep.subr.mxu0 0.0
    %299 = vmatpush1.msra.mxu0 0.0
    %300 = vmatprep.subr.mxu0 0.0
    %301 = vmatpush1.msra.mxu0 0.0
    %302 = vmatprep.subr.mxu0 0.0
    %303 = vmatpush1.msra.mxu0 0.0
    %304 = vmatprep.subr.mxu0 0.0
    %305 = vmatpush1.msra.mxu0 0.0
    %306 = vmatprep.subr.mxu0 0.0
    %307 = vmatpush1.msra.mxu0 0.0
    %308 = vmatprep.mubr.f32.mxu0 0.0
    %v309 = vand.u32 %v64, 4294901760
    %v310 = vsub.f32 %v64, %v309
    %311 = vmatmul.mubr.f32.gmra.mrb[0].mxu0 %v310
    %v312 = vpop.f32.mrb[0].mxu0
    %v313 = vadd.f32 %v233, %v312
    %v314 = vpop.f32.mrb[0].mxu0
    %315 = vdwg.mxu0
    %316 = vmatprep.subr.mxu0 0.0
    %v317 = vand.u32 %v51, 4294901760
    %318 = vmatpush1.msra.mxu0 %v317
    %319 = vmatprep.subr.mxu0 0.0
    %v320 = vand.u32 %v52, 4294901760
    %321 = vmatpush1.msra.mxu0 %v320
    %322 = vmatprep.subr.mxu0 0.0
    %v323 = vand.u32 %v53, 4294901760
    %324 = vmatpush1.msra.mxu0 %v323
    %325 = vmatprep.subr.mxu0 0.0
    %v326 = vand.u32 %v54, 4294901760
    %327 = vmatpush1.msra.mxu0 %v326
    %328 = vmatprep.subr.mxu0 0.0
    %329 = vmatpush1.msra.mxu0 0.0
    %330 = vmatprep.subr.mxu0 0.0
    %331 = vmatpush1.msra.mxu0 0.0
    %332 = vmatprep.subr.mxu0 0.0
    %333 = vmatpush1.msra.mxu0 0.0
    %334 = vmatprep.subr.mxu0 0.0
    %335 = vmatpush1.msra.mxu0 0.0
    %336 = vmatprep.subr.mxu0 0.0
    %337 = vmatpush1.msra.mxu0 0.0
    %338 = vmatprep.subr.mxu0 0.0
    %339 = vmatpush1.msra.mxu0 0.0
    %340 = vmatprep.subr.mxu0 0.0
    %341 = vmatpush1.msra.mxu0 0.0
    %342 = vmatprep.subr.mxu0 0.0
    %343 = vmatpush1.msra.mxu0 0.0
    %344 = vmatprep.subr.mxu0 0.0
    %345 = vmatpush1.msra.mxu0 0.0
    %346 = vmatprep.subr.mxu0 0.0
    %347 = vmatpush1.msra.mxu0 0.0
    %348 = vmatprep.subr.mxu0 0.0
    %349 = vmatpush1.msra.mxu0 0.0
    %350 = vmatprep.subr.mxu0 0.0
    %351 = vmatpush1.msra.mxu0 0.0
    %352 = vmatprep.subr.mxu0 0.0
    %353 = vmatpush1.msra.mxu0 0.0
    %354 = vmatprep.subr.mxu0 0.0
    %355 = vmatpush1.msra.mxu0 0.0
    %356 = vmatprep.subr.mxu0 0.0
    %357 = vmatpush1.msra.mxu0 0.0
    %358 = vmatprep.subr.mxu0 0.0
    %359 = vmatpush1.msra.mxu0 0.0
    %360 = vmatprep.subr.mxu0 0.0
    %361 = vmatpush1.msra.mxu0 0.0
    %362 = vmatprep.subr.mxu0 0.0
    %363 = vmatpush1.msra.mxu0 0.0
    %364 = vmatprep.subr.mxu0 0.0
    %365 = vmatpush1.msra.mxu0 0.0
    %366 = vmatprep.subr.mxu0 0.0
    %367 = vmatpush1.msra.mxu0 0.0
    %368 = vmatprep.subr.mxu0 0.0
    %369 = vmatpush1.msra.mxu0 0.0
    %370 = vmatprep.subr.mxu0 0.0
    %371 = vmatpush1.msra.mxu0 0.0
    %372 = vmatprep.subr.mxu0 0.0
    %373 = vmatpush1.msra.mxu0 0.0
    %374 = vmatprep.subr.mxu0 0.0
    %375 = vmatpush1.msra.mxu0 0.0
    %376 = vmatprep.subr.mxu0 0.0
    %377 = vmatpush1.msra.mxu0 0.0
    %378 = vmatprep.subr.mxu0 0.0
    %379 = vmatpush1.msra.mxu0 0.0
    %380 = vmatprep.subr.mxu0 0.0
    %381 = vmatpush1.msra.mxu0 0.0
    %382 = vmatprep.subr.mxu0 0.0
    %383 = vmatpush1.msra.mxu0 0.0
    %384 = vmatprep.mubr.f32.mxu0 0.0
    %v385 = vand.u32 %v64, 4294901760
    %v386 = vsub.f32 %v64, %v385
    %v387 = vand.u32 %v386, 4294901760
    %388 = vmatmul.mubr.f32.gmra.mrb[0].mxu0 %v387
    %v389 = vpop.f32.mrb[0].mxu0
    %v390 = vadd.f32 %v313, %v389
    %v391 = vpop.f32.mrb[0].mxu0
    %392 = vdwg.mxu0
    %393 = vmatprep.subr.mxu0 0.0
    %v394 = vand.u32 %v51, 4294901760
    %v395 = vsub.f32 %v51, %v394
    %v396 = vand.u32 %v395, 4294901760
    %397 = vmatpush1.msra.mxu0 %v396
    %398 = vmatprep.subr.mxu0 0.0
    %v399 = vand.u32 %v52, 4294901760
    %v400 = vsub.f32 %v52, %v399
    %v401 = vand.u32 %v400, 4294901760
    %402 = vmatpush1.msra.mxu0 %v401
    %403 = vmatprep.subr.mxu0 0.0
    %v404 = vand.u32 %v53, 4294901760
    %v405 = vsub.f32 %v53, %v404
    %v406 = vand.u32 %v405, 4294901760
    %407 = vmatpush1.msra.mxu0 %v406
    %408 = vmatprep.subr.mxu0 0.0
    %v409 = vand.u32 %v54, 4294901760
    %v410 = vsub.f32 %v54, %v409
    %v411 = vand.u32 %v410, 4294901760
    %412 = vmatpush1.msra.mxu0 %v411
    %413 = vmatprep.subr.mxu0 0.0
    %414 = vmatpush1.msra.mxu0 0.0
    %415 = vmatprep.subr.mxu0 0.0
    %416 = vmatpush1.msra.mxu0 0.0
    %417 = vmatprep.subr.mxu0 0.0
    %418 = vmatpush1.msra.mxu0 0.0
    %419 = vmatprep.subr.mxu0 0.0
    %420 = vmatpush1.msra.mxu0 0.0
    %421 = vmatprep.subr.mxu0 0.0
    %422 = vmatpush1.msra.mxu0 0.0
    %423 = vmatprep.subr.mxu0 0.0
    %424 = vmatpush1.msra.mxu0 0.0
    %425 = vmatprep.subr.mxu0 0.0
    %426 = vmatpush1.msra.mxu0 0.0
    %427 = vmatprep.subr.mxu0 0.0
    %428 = vmatpush1.msra.mxu0 0.0
    %429 = vmatprep.subr.mxu0 0.0
    %430 = vmatpush1.msra.mxu0 0.0
    %431 = vmatprep.subr.mxu0 0.0
    %432 = vmatpush1.msra.mxu0 0.0
    %433 = vmatprep.subr.mxu0 0.0
    %434 = vmatpush1.msra.mxu0 0.0
    %435 = vmatprep.subr.mxu0 0.0
    %436 = vmatpush1.msra.mxu0 0.0
    %437 = vmatprep.subr.mxu0 0.0
    %438 = vmatpush1.msra.mxu0 0.0
    %439 = vmatprep.subr.mxu0 0.0
    %440 = vmatpush1.msra.mxu0 0.0
    %441 = vmatprep.subr.mxu0 0.0
    %442 = vmatpush1.msra.mxu0 0.0
    %443 = vmatprep.subr.mxu0 0.0
    %444 = vmatpush1.msra.mxu0 0.0
    %445 = vmatprep.subr.mxu0 0.0
    %446 = vmatpush1.msra.mxu0 0.0
    %447 = vmatprep.subr.mxu0 0.0
    %448 = vmatpush1.msra.mxu0 0.0
    %449 = vmatprep.subr.mxu0 0.0
    %450 = vmatpush1.msra.mxu0 0.0
    %451 = vmatprep.subr.mxu0 0.0
    %452 = vmatpush1.msra.mxu0 0.0
    %453 = vmatprep.subr.mxu0 0.0
    %454 = vmatpush1.msra.mxu0 0.0
    %455 = vmatprep.subr.mxu0 0.0
    %456 = vmatpush1.msra.mxu0 0.0
    %457 = vmatprep.subr.mxu0 0.0
    %458 = vmatpush1.msra.mxu0 0.0
    %459 = vmatprep.subr.mxu0 0.0
    %460 = vmatpush1.msra.mxu0 0.0
    %461 = vmatprep.subr.mxu0 0.0
    %462 = vmatpush1.msra.mxu0 0.0
    %463 = vmatprep.subr.mxu0 0.0
    %464 = vmatpush1.msra.mxu0 0.0
    %465 = vmatprep.subr.mxu0 0.0
    %466 = vmatpush1.msra.mxu0 0.0
    %467 = vmatprep.subr.mxu0 0.0
    %468 = vmatpush1.msra.mxu0 0.0
    %469 = vmatprep.mubr.f32.mxu0 0.0
    %v470 = vand.u32 %v64, 4294901760
    %471 = vmatmul.mubr.f32.gmra.mrb[0].mxu0 %v470
    %v472 = vpop.f32.mrb[0].mxu0
    %v473 = vadd.f32 %v390, %v472
    %v474 = vpop.f32.mrb[0].mxu0
    %475 = vdwg.mxu0
    %476 = vmatprep.subr.mxu0 0.0
    %v477 = vand.u32 %v51, 4294901760
    %478 = vmatpush1.msra.mxu0 %v477
    %479 = vmatprep.subr.mxu0 0.0
    %v480 = vand.u32 %v52, 4294901760
    %481 = vmatpush1.msra.mxu0 %v480
    %482 = vmatprep.subr.mxu0 0.0
    %v483 = vand.u32 %v53, 4294901760
    %484 = vmatpush1.msra.mxu0 %v483
    %485 = vmatprep.subr.mxu0 0.0
    %v486 = vand.u32 %v54, 4294901760
    %487 = vmatpush1.msra.mxu0 %v486
    %488 = vmatprep.subr.mxu0 0.0
    %489 = vmatpush1.msra.mxu0 0.0
    %490 = vmatprep.subr.mxu0 0.0
    %491 = vmatpush1.msra.mxu0 0.0
    %492 = vmatprep.subr.mxu0 0.0
    %493 = vmatpush1.msra.mxu0 0.0
    %494 = vmatprep.subr.mxu0 0.0
    %495 = vmatpush1.msra.mxu0 0.0
    %496 = vmatprep.subr.mxu0 0.0
    %497 = vmatpush1.msra.mxu0 0.0
    %498 = vmatprep.subr.mxu0 0.0
    %499 = vmatpush1.msra.mxu0 0.0
    %500 = vmatprep.subr.mxu0 0.0
    %501 = vmatpush1.msra.mxu0 0.0
    %502 = vmatprep.subr.mxu0 0.0
    %503 = vmatpush1.msra.mxu0 0.0
    %504 = vmatprep.subr.mxu0 0.0
    %505 = vmatpush1.msra.mxu0 0.0
    %506 = vmatprep.subr.mxu0 0.0
    %507 = vmatpush1.msra.mxu0 0.0
    %508 = vmatprep.subr.mxu0 0.0
    %509 = vmatpush1.msra.mxu0 0.0
    %510 = vmatprep.subr.mxu0 0.0
    %511 = vmatpush1.msra.mxu0 0.0
    %512 = vmatprep.subr.mxu0 0.0
    %513 = vmatpush1.msra.mxu0 0.0
    %514 = vmatprep.subr.mxu0 0.0
    %515 = vmatpush1.msra.mxu0 0.0
    %516 = vmatprep.subr.mxu0 0.0
    %517 = vmatpush1.msra.mxu0 0.0
    %518 = vmatprep.subr.mxu0 0.0
    %519 = vmatpush1.msra.mxu0 0.0
    %520 = vmatprep.subr.mxu0 0.0
    %521 = vmatpush1.msra.mxu0 0.0
    %522 = vmatprep.subr.mxu0 0.0
    %523 = vmatpush1.msra.mxu0 0.0
    %524 = vmatprep.subr.mxu0 0.0
    %525 = vmatpush1.msra.mxu0 0.0
    %526 = vmatprep.subr.mxu0 0.0
    %527 = vmatpush1.msra.mxu0 0.0
    %528 = vmatprep.subr.mxu0 0.0
    %529 = vmatpush1.msra.mxu0 0.0
    %530 = vmatprep.subr.mxu0 0.0
    %531 = vmatpush1.msra.mxu0 0.0
    %532 = vmatprep.subr.mxu0 0.0
    %533 = vmatpush1.msra.mxu0 0.0
    %534 = vmatprep.subr.mxu0 0.0
    %535 = vmatpush1.msra.mxu0 0.0
    %536 = vmatprep.subr.mxu0 0.0
    %537 = vmatpush1.msra.mxu0 0.0
    %538 = vmatprep.subr.mxu0 0.0
    %539 = vmatpush1.msra.mxu0 0.0
    %540 = vmatprep.subr.mxu0 0.0
    %541 = vmatpush1.msra.mxu0 0.0
    %542 = vmatprep.subr.mxu0 0.0
    %543 = vmatpush1.msra.mxu0 0.0
    %544 = vmatprep.mubr.f32.mxu0 0.0
    %v545 = vand.u32 %v64, 4294901760
    %546 = vmatmul.mubr.f32.gmra.mrb[0].mxu0 %v545
    %v547 = vpop.f32.mrb[0].mxu0
    %v548 = vadd.f32 %v473, %v547
    %v549 = vpop.f32.mrb[0].mxu0
    %550 = vdwg.mxu0
    %v551 = vmax.f32 %v548, 0.0
    %v552 = vld [vmem:[%s6] sm:$0xff]
    %v553 = vld [vmem:[%s6 + $0x8] sm:$0xff]
    %v554 = vld [vmem:[%s6 + $0x10] sm:$0xff]
    %v555 = vld [vmem:[%s6 + $0x18] sm:$0xff]
    %v556 = vld [vmem:[%s7] sm:$0x1]
    %v558 = vlaneseq
    %v559 = vshrl.u32 %v558, 7
    %v560 = vsub.s32 0, %v559
    %v561 = vrot.slane %v556, %v560
    %563 = vmatprep.subr.mxu0 0.0
    %v564 = vand.u32 %v552, 4294901760
    %565 = vmatpush1.msra.mxu0 %v564
    %566 = vmatprep.subr.mxu0 0.0
    %v567 = vand.u32 %v553, 4294901760
    %568 = vmatpush1.msra.mxu0 %v567
    %569 = vmatprep.subr.mxu0 0.0
    %v570 = vand.u32 %v554, 4294901760
    %571 = vmatpush1.msra.mxu0 %v570
    %572 = vmatprep.subr.mxu0 0.0
    %v573 = vand.u32 %v555, 4294901760
    %574 = vmatpush1.msra.mxu0 %v573
    %575 = vmatprep.subr.mxu0 0.0
    %576 = vmatpush1.msra.mxu0 0.0
    %577 = vmatprep.subr.mxu0 0.0
    %578 = vmatpush1.msra.mxu0 0.0
    %579 = vmatprep.subr.mxu0 0.0
    %580 = vmatpush1.msra.mxu0 0.0
    %581 = vmatprep.subr.mxu0 0.0
    %582 = vmatpush1.msra.mxu0 0.0
    %583 = vmatprep.subr.mxu0 0.0
    %584 = vmatpush1.msra.mxu0 0.0
    %585 = vmatprep.subr.mxu0 0.0
    %586 = vmatpush1.msra.mxu0 0.0
    %587 = vmatprep.subr.mxu0 0.0
    %588 = vmatpush1.msra.mxu0 0.0
    %589 = vmatprep.subr.mxu0 0.0
    %590 = vmatpush1.msra.mxu0 0.0
    %591 = vmatprep.subr.mxu0 0.0
    %592 = vmatpush1.msra.mxu0 0.0
    %593 = vmatprep.subr.mxu0 0.0
    %594 = vmatpush1.msra.mxu0 0.0
    %595 = vmatprep.subr.mxu0 0.0
    %596 = vmatpush1.msra.mxu0 0.0
    %597 = vmatprep.subr.mxu0 0.0
    %598 = vmatpush1.msra.mxu0 0.0
    %599 = vmatprep.subr.mxu0 0.0
    %600 = vmatpush1.msra.mxu0 0.0
    %601 = vmatprep.subr.mxu0 0.0
    %602 = vmatpush1.msra.mxu0 0.0
    %603 = vmatprep.subr.mxu0 0.0
    %604 = vmatpush1.msra.mxu0 0.0
    %605 = vmatprep.subr.mxu0 0.0
    %606 = vmatpush1.msra.mxu0 0.0
    %607 = vmatprep.subr.mxu0 0.0
    %608 = vmatpush1.msra.mxu0 0.0
    %609 = vmatprep.subr.mxu0 0.0
    %610 = vmatpush1.msra.mxu0 0.0
    %611 = vmatprep.subr.mxu0 0.0
    %612 = vmatpush1.msra.mxu0 0.0
    %613 = vmatprep.subr.mxu0 0.0
    %614 = vmatpush1.msra.mxu0 0.0
    %615 = vmatprep.subr.mxu0 0.0
    %616 = vmatpush1.msra.mxu0 0.0
    %617 = vmatprep.subr.mxu0 0.0
    %618 = vmatpush1.msra.mxu0 0.0
    %619 = vmatprep.subr.mxu0 0.0
    %620 = vmatpush1.msra.mxu0 0.0
    %621 = vmatprep.subr.mxu0 0.0
    %622 = vmatpush1.msra.mxu0 0.0
    %623 = vmatprep.subr.mxu0 0.0
    %624 = vmatpush1.msra.mxu0 0.0
    %625 = vmatprep.subr.mxu0 0.0
    %626 = vmatpush1.msra.mxu0 0.0
    %627 = vmatprep.subr.mxu0 0.0
    %628 = vmatpush1.msra.mxu0 0.0
    %629 = vmatprep.subr.mxu0 0.0
    %630 = vmatpush1.msra.mxu0 0.0
    %631 = vmatprep.mubr.f32.mxu0 0.0
    %v632 = vand.u32 %v64, 4294901760
    %v633 = vsub.f32 %v64, %v632
    %v634 = vand.u32 %v633, 4294901760
    %v635 = vsub.f32 %v633, %v634
    %v636 = vand.u32 %v635, 4294901760
    %637 = vmatmul.mubr.f32.gmra.mrb[0].mxu0 %v636
    %v638 = vpop.f32.mrb[0].mxu0
    %v639 = vadd.f32 %v561, %v638
    %v640 = vpop.f32.mrb[0].mxu0
    %641 = vdwg.mxu0
    %642 = vmatprep.subr.mxu0 0.0
    %v643 = vand.u32 %v552, 4294901760
    %v644 = vsub.f32 %v552, %v643
    %v645 = vand.u32 %v644, 4294901760
    %v646 = vsub.f32 %v644, %v645
    %v647 = vand.u32 %v646, 4294901760
    %648 = vmatpush1.msra.mxu0 %v647
    %649 = vmatprep.subr.mxu0 0.0
    %v650 = vand.u32 %v553, 4294901760
    %v651 = vsub.f32 %v553, %v650
    %v652 = vand.u32 %v651, 4294901760
    %v653 = vsub.f32 %v651, %v652
    %v654 = vand.u32 %v653, 4294901760
    %655 = vmatpush1.msra.mxu0 %v654
    %656 = vmatprep.subr.mxu0 0.0
    %v657 = vand.u32 %v554, 4294901760
    %v658 = vsub.f32 %v554, %v657
    %v659 = vand.u32 %v658, 4294901760
    %v660 = vsub.f32 %v658, %v659
    %v661 = vand.u32 %v660, 4294901760
    %662 = vmatpush1.msra.mxu0 %v661
    %663 = vmatprep.subr.mxu0 0.0
    %v664 = vand.u32 %v555, 4294901760
    %v665 = vsub.f32 %v555, %v664
    %v666 = vand.u32 %v665, 4294901760
    %v667 = vsub.f32 %v665, %v666
    %v668 = vand.u32 %v667, 4294901760
    %669 = vmatpush1.msra.mxu0 %v668
    %670 = vmatprep.subr.mxu0 0.0
    %671 = vmatpush1.msra.mxu0 0.0
    %672 = vmatprep.subr.mxu0 0.0
    %673 = vmatpush1.msra.mxu0 0.0
    %674 = vmatprep.subr.mxu0 0.0
    %675 = vmatpush1.msra.mxu0 0.0
    %676 = vmatprep.subr.mxu0 0.0
    %677 = vmatpush1.msra.mxu0 0.0
    %678 = vmatprep.subr.mxu0 0.0
    %679 = vmatpush1.msra.mxu0 0.0
    %680 = vmatprep.subr.mxu0 0.0
    %681 = vmatpush1.msra.mxu0 0.0
    %682 = vmatprep.subr.mxu0 0.0
    %683 = vmatpush1.msra.mxu0 0.0
    %684 = vmatprep.subr.mxu0 0.0
    %685 = vmatpush1.msra.mxu0 0.0
    %686 = vmatprep.subr.mxu0 0.0
    %687 = vmatpush1.msra.mxu0 0.0
    %688 = vmatprep.subr.mxu0 0.0
    %689 = vmatpush1.msra.mxu0 0.0
    %690 = vmatprep.subr.mxu0 0.0
    %691 = vmatpush1.msra.mxu0 0.0
    %692 = vmatprep.subr.mxu0 0.0
    %693 = vmatpush1.msra.mxu0 0.0
    %694 = vmatprep.subr.mxu0 0.0
    %695 = vmatpush1.msra.mxu0 0.0
    %696 = vmatprep.subr.mxu0 0.0
    %697 = vmatpush1.msra.mxu0 0.0
    %698 = vmatprep.subr.mxu0 0.0
    %699 = vmatpush1.msra.mxu0 0.0
    %700 = vmatprep.subr.mxu0 0.0
    %701 = vmatpush1.msra.mxu0 0.0
    %702 = vmatprep.subr.mxu0 0.0
    %703 = vmatpush1.msra.mxu0 0.0
    %704 = vmatprep.subr.mxu0 0.0
    %705 = vmatpush1.msra.mxu0 0.0
    %706 = vmatprep.subr.mxu0 0.0
    %707 = vmatpush1.msra.mxu0 0.0
    %708 = vmatprep.subr.mxu0 0.0
    %709 = vmatpush1.msra.mxu0 0.0
    %710 = vmatprep.subr.mxu0 0.0
    %711 = vmatpush1.msra.mxu0 0.0
    %712 = vmatprep.subr.mxu0 0.0
    %713 = vmatpush1.msra.mxu0 0.0
    %714 = vmatprep.subr.mxu0 0.0
    %715 = vmatpush1.msra.mxu0 0.0
    %716 = vmatprep.subr.mxu0 0.0
    %717 = vmatpush1.msra.mxu0 0.0
    %718 = vmatprep.subr.mxu0 0.0
    %719 = vmatpush1.msra.mxu0 0.0
    %720 = vmatprep.subr.mxu0 0.0
    %721 = vmatpush1.msra.mxu0 0.0
    %722 = vmatprep.subr.mxu0 0.0
    %723 = vmatpush1.msra.mxu0 0.0
    %724 = vmatprep.subr.mxu0 0.0
    %725 = vmatpush1.msra.mxu0 0.0
    %726 = vmatprep.mubr.f32.mxu0 0.0
    %v727 = vand.u32 %v64, 4294901760
    %728 = vmatmul.mubr.f32.gmra.mrb[0].mxu0 %v727
    %v729 = vpop.f32.mrb[0].mxu0
    %v730 = vadd.f32 %v639, %v729
    %v731 = vpop.f32.mrb[0].mxu0
    %732 = vdwg.mxu0
    %733 = vmatprep.subr.mxu0 0.0
    %v734 = vand.u32 %v552, 4294901760
    %v735 = vsub.f32 %v552, %v734
    %736 = vmatpush1.msra.mxu0 %v735
    %737 = vmatprep.subr.mxu0 0.0
    %v738 = vand.u32 %v553, 4294901760
    %v739 = vsub.f32 %v553, %v738
    %740 = vmatpush1.msra.mxu0 %v739
    %741 = vmatprep.subr.mxu0 0.0
    %v742 = vand.u32 %v554, 4294901760
    %v743 = vsub.f32 %v554, %v742
    %744 = vmatpush1.msra.mxu0 %v743
    %745 = vmatprep.subr.mxu0 0.0
    %v746 = vand.u32 %v555, 4294901760
    %v747 = vsub.f32 %v555, %v746
    %748 = vmatpush1.msra.mxu0 %v747
    %749 = vmatprep.subr.mxu0 0.0
    %750 = vmatpush1.msra.mxu0 0.0
    %751 = vmatprep.subr.mxu0 0.0
    %752 = vmatpush1.msra.mxu0 0.0
    %753 = vmatprep.subr.mxu0 0.0
    %754 = vmatpush1.msra.mxu0 0.0
    %755 = vmatprep.subr.mxu0 0.0
    %756 = vmatpush1.msra.mxu0 0.0
    %757 = vmatprep.subr.mxu0 0.0
    %758 = vmatpush1.msra.mxu0 0.0
    %759 = vmatprep.subr.mxu0 0.0
    %760 = vmatpush1.msra.mxu0 0.0
    %761 = vmatprep.subr.mxu0 0.0
    %762 = vmatpush1.msra.mxu0 0.0
    %763 = vmatprep.subr.mxu0 0.0
    %764 = vmatpush1.msra.mxu0 0.0
    %765 = vmatprep.subr.mxu0 0.0
    %766 = vmatpush1.msra.mxu0 0.0
    %767 = vmatprep.subr.mxu0 0.0
    %768 = vmatpush1.msra.mxu0 0.0
    %769 = vmatprep.subr.mxu0 0.0
    %770 = vmatpush1.msra.mxu0 0.0
    %771 = vmatprep.subr.mxu0 0.0
    %772 = vmatpush1.msra.mxu0 0.0
    %773 = vmatprep.subr.mxu0 0.0
    %774 = vmatpush1.msra.mxu0 0.0
    %775 = vmatprep.subr.mxu0 0.0
    %776 = vmatpush1.msra.mxu0 0.0
    %777 = vmatprep.subr.mxu0 0.0
    %778 = vmatpush1.msra.mxu0 0.0
    %779 = vmatprep.subr.mxu0 0.0
    %780 = vmatpush1.msra.mxu0 0.0
    %781 = vmatprep.subr.mxu0 0.0
    %782 = vmatpush1.msra.mxu0 0.0
    %783 = vmatprep.subr.mxu0 0.0
    %784 = vmatpush1.msra.mxu0 0.0
    %785 = vmatprep.subr.mxu0 0.0
    %786 = vmatpush1.msra.mxu0 0.0
    %787 = vmatprep.subr.mxu0 0.0
    %788 = vmatpush1.msra.mxu0 0.0
    %789 = vmatprep.subr.mxu0 0.0
    %790 = vmatpush1.msra.mxu0 0.0
    %791 = vmatprep.subr.mxu0 0.0
    %792 = vmatpush1.msra.mxu0 0.0
    %793 = vmatprep.subr.mxu0 0.0
    %794 = vmatpush1.msra.mxu0 0.0
    %795 = vmatprep.subr.mxu0 0.0
    %796 = vmatpush1.msra.mxu0 0.0
    %797 = vmatprep.subr.mxu0 0.0
    %798 = vmatpush1.msra.mxu0 0.0
    %799 = vmatprep.subr.mxu0 0.0
    %800 = vmatpush1.msra.mxu0 0.0
    %801 = vmatprep.subr.mxu0 0.0
    %802 = vmatpush1.msra.mxu0 0.0
    %803 = vmatprep.subr.mxu0 0.0
    %804 = vmatpush1.msra.mxu0 0.0
    %805 = vmatprep.mubr.f32.mxu0 0.0
    %v806 = vand.u32 %v64, 4294901760
    %v807 = vsub.f32 %v64, %v806
    %808 = vmatmul.mubr.f32.gmra.mrb[0].mxu0 %v807
    %v809 = vpop.f32.mrb[0].mxu0
    %v810 = vadd.f32 %v730, %v809
    %v811 = vpop.f32.mrb[0].mxu0
    %812 = vdwg.mxu0
    %813 = vmatprep.subr.mxu0 0.0
    %v814 = vand.u32 %v552, 4294901760
    %815 = vmatpush1.msra.mxu0 %v814
    %816 = vmatprep.subr.mxu0 0.0
    %v817 = vand.u32 %v553, 4294901760
    %818 = vmatpush1.msra.mxu0 %v817
    %819 = vmatprep.subr.mxu0 0.0
    %v820 = vand.u32 %v554, 4294901760
    %821 = vmatpush1.msra.mxu0 %v820
    %822 = vmatprep.subr.mxu0 0.0
    %v823 = vand.u32 %v555, 4294901760
    %824 = vmatpush1.msra.mxu0 %v823
    %825 = vmatprep.subr.mxu0 0.0
    %826 = vmatpush1.msra.mxu0 0.0
    %827 = vmatprep.subr.mxu0 0.0
    %828 = vmatpush1.msra.mxu0 0.0
    %829 = vmatprep.subr.mxu0 0.0
    %830 = vmatpush1.msra.mxu0 0.0
    %831 = vmatprep.subr.mxu0 0.0
    %832 = vmatpush1.msra.mxu0 0.0
    %833 = vmatprep.subr.mxu0 0.0
    %834 = vmatpush1.msra.mxu0 0.0
    %835 = vmatprep.subr.mxu0 0.0
    %836 = vmatpush1.msra.mxu0 0.0
    %837 = vmatprep.subr.mxu0 0.0
    %838 = vmatpush1.msra.mxu0 0.0
    %839 = vmatprep.subr.mxu0 0.0
    %840 = vmatpush1.msra.mxu0 0.0
    %841 = vmatprep.subr.mxu0 0.0
    %842 = vmatpush1.msra.mxu0 0.0
    %843 = vmatprep.subr.mxu0 0.0
    %844 = vmatpush1.msra.mxu0 0.0
    %845 = vmatprep.subr.mxu0 0.0
    %846 = vmatpush1.msra.mxu0 0.0
    %847 = vmatprep.subr.mxu0 0.0
    %848 = vmatpush1.msra.mxu0 0.0
    %849 = vmatprep.subr.mxu0 0.0
    %850 = vmatpush1.msra.mxu0 0.0
    %851 = vmatprep.subr.mxu0 0.0
    %852 = vmatpush1.msra.mxu0 0.0
    %853 = vmatprep.subr.mxu0 0.0
    %854 = vmatpush1.msra.mxu0 0.0
    %855 = vmatprep.subr.mxu0 0.0
    %856 = vmatpush1.msra.mxu0 0.0
    %857 = vmatprep.subr.mxu0 0.0
    %858 = vmatpush1.msra.mxu0 0.0
    %859 = vmatprep.subr.mxu0 0.0
    %860 = vmatpush1.msra.mxu0 0.0
    %861 = vmatprep.subr.mxu0 0.0
    %862 = vmatpush1.msra.mxu0 0.0
    %863 = vmatprep.subr.mxu0 0.0
    %864 = vmatpush1.msra.mxu0 0.0
    %865 = vmatprep.subr.mxu0 0.0
    %866 = vmatpush1.msra.mxu0 0.0
    %867 = vmatprep.subr.mxu0 0.0
    %868 = vmatpush1.msra.mxu0 0.0
    %869 = vmatprep.subr.mxu0 0.0
    %870 = vmatpush1.msra.mxu0 0.0
    %871 = vmatprep.subr.mxu0 0.0
    %872 = vmatpush1.msra.mxu0 0.0
    %873 = vmatprep.subr.mxu0 0.0
    %874 = vmatpush1.msra.mxu0 0.0
    %875 = vmatprep.subr.mxu0 0.0
    %876 = vmatpush1.msra.mxu0 0.0
    %877 = vmatprep.subr.mxu0 0.0
    %878 = vmatpush1.msra.mxu0 0.0
    %879 = vmatprep.subr.mxu0 0.0
    %880 = vmatpush1.msra.mxu0 0.0
    %881 = vmatprep.mubr.f32.mxu0 0.0
    %v882 = vand.u32 %v64, 4294901760
    %v883 = vsub.f32 %v64, %v882
    %v884 = vand.u32 %v883, 4294901760
    %885 = vmatmul.mubr.f32.gmra.mrb[0].mxu0 %v884
    %v886 = vpop.f32.mrb[0].mxu0
    %v887 = vadd.f32 %v810, %v886
    %v888 = vpop.f32.mrb[0].mxu0
    %889 = vdwg.mxu0
    %890 = vmatprep.subr.mxu0 0.0
    %v891 = vand.u32 %v552, 4294901760
    %v892 = vsub.f32 %v552, %v891
    %v893 = vand.u32 %v892, 4294901760
    %894 = vmatpush1.msra.mxu0 %v893
    %895 = vmatprep.subr.mxu0 0.0
    %v896 = vand.u32 %v553, 4294901760
    %v897 = vsub.f32 %v553, %v896
    %v898 = vand.u32 %v897, 4294901760
    %899 = vmatpush1.msra.mxu0 %v898
    %900 = vmatprep.subr.mxu0 0.0
    %v901 = vand.u32 %v554, 4294901760
    %v902 = vsub.f32 %v554, %v901
    %v903 = vand.u32 %v902, 4294901760
    %904 = vmatpush1.msra.mxu0 %v903
    %905 = vmatprep.subr.mxu0 0.0
    %v906 = vand.u32 %v555, 4294901760
    %v907 = vsub.f32 %v555, %v906
    %v908 = vand.u32 %v907, 4294901760
    %909 = vmatpush1.msra.mxu0 %v908
    %910 = vmatprep.subr.mxu0 0.0
    %911 = vmatpush1.msra.mxu0 0.0
    %912 = vmatprep.subr.mxu0 0.0
    %913 = vmatpush1.msra.mxu0 0.0
    %914 = vmatprep.subr.mxu0 0.0
    %915 = vmatpush1.msra.mxu0 0.0
    %916 = vmatprep.subr.mxu0 0.0
    %917 = vmatpush1.msra.mxu0 0.0
    %918 = vmatprep.subr.mxu0 0.0
    %919 = vmatpush1.msra.mxu0 0.0
    %920 = vmatprep.subr.mxu0 0.0
    %921 = vmatpush1.msra.mxu0 0.0
    %922 = vmatprep.subr.mxu0 0.0
    %923 = vmatpush1.msra.mxu0 0.0
    %924 = vmatprep.subr.mxu0 0.0
    %925 = vmatpush1.msra.mxu0 0.0
    %926 = vmatprep.subr.mxu0 0.0
    %927 = vmatpush1.msra.mxu0 0.0
    %928 = vmatprep.subr.mxu0 0.0
    %929 = vmatpush1.msra.mxu0 0.0
    %930 = vmatprep.subr.mxu0 0.0
    %931 = vmatpush1.msra.mxu0 0.0
    %932 = vmatprep.subr.mxu0 0.0
    %933 = vmatpush1.msra.mxu0 0.0
    %934 = vmatprep.subr.mxu0 0.0
    %935 = vmatpush1.msra.mxu0 0.0
    %936 = vmatprep.subr.mxu0 0.0
    %937 = vmatpush1.msra.mxu0 0.0
    %938 = vmatprep.subr.mxu0 0.0
    %939 = vmatpush1.msra.mxu0 0.0
    %940 = vmatprep.subr.mxu0 0.0
    %941 = vmatpush1.msra.mxu0 0.0
    %942 = vmatprep.subr.mxu0 0.0
    %943 = vmatpush1.msra.mxu0 0.0
    %944 = vmatprep.subr.mxu0 0.0
    %945 = vmatpush1.msra.mxu0 0.0
    %946 = vmatprep.subr.mxu0 0.0
    %947 = vmatpush1.msra.mxu0 0.0
    %948 = vmatprep.subr.mxu0 0.0
    %949 = vmatpush1.msra.mxu0 0.0
    %950 = vmatprep.subr.mxu0 0.0
    %951 = vmatpush1.msra.mxu0 0.0
    %952 = vmatprep.subr.mxu0 0.0
    %953 = vmatpush1.msra.mxu0 0.0
    %954 = vmatprep.subr.mxu0 0.0
    %955 = vmatpush1.msra.mxu0 0.0
    %956 = vmatprep.subr.mxu0 0.0
    %957 = vmatpush1.msra.mxu0 0.0
    %958 = vmatprep.subr.mxu0 0.0
    %959 = vmatpush1.msra.mxu0 0.0
    %960 = vmatprep.subr.mxu0 0.0
    %961 = vmatpush1.msra.mxu0 0.0
    %962 = vmatprep.subr.mxu0 0.0
    %963 = vmatpush1.msra.mxu0 0.0
    %964 = vmatprep.subr.mxu0 0.0
    %965 = vmatpush1.msra.mxu0 0.0
    %966 = vmatprep.mubr.f32.mxu0 0.0
    %v967 = vand.u32 %v64, 4294901760
    %968 = vmatmul.mubr.f32.gmra.mrb[0].mxu0 %v967
    %v969 = vpop.f32.mrb[0].mxu0
    %v970 = vadd.f32 %v887, %v969
    %v971 = vpop.f32.mrb[0].mxu0
    %972 = vdwg.mxu0
    %973 = vmatprep.subr.mxu0 0.0
    %v974 = vand.u32 %v552, 4294901760
    %975 = vmatpush1.msra.mxu0 %v974
    %976 = vmatprep.subr.mxu0 0.0
    %v977 = vand.u32 %v553, 4294901760
    %978 = vmatpush1.msra.mxu0 %v977
    %979 = vmatprep.subr.mxu0 0.0
    %v980 = vand.u32 %v554, 4294901760
    %981 = vmatpush1.msra.mxu0 %v980
    %982 = vmatprep.subr.mxu0 0.0
    %v983 = vand.u32 %v555, 4294901760
    %984 = vmatpush1.msra.mxu0 %v983
    %985 = vmatprep.subr.mxu0 0.0
    %986 = vmatpush1.msra.mxu0 0.0
    %987 = vmatprep.subr.mxu0 0.0
    %988 = vmatpush1.msra.mxu0 0.0
    %989 = vmatprep.subr.mxu0 0.0
    %990 = vmatpush1.msra.mxu0 0.0
    %991 = vmatprep.subr.mxu0 0.0
    %992 = vmatpush1.msra.mxu0 0.0
    %993 = vmatprep.subr.mxu0 0.0
    %994 = vmatpush1.msra.mxu0 0.0
    %995 = vmatprep.subr.mxu0 0.0
    %996 = vmatpush1.msra.mxu0 0.0
    %997 = vmatprep.subr.mxu0 0.0
    %998 = vmatpush1.msra.mxu0 0.0
    %999 = vmatprep.subr.mxu0 0.0
    %1000 = vmatpush1.msra.mxu0 0.0
    %1001 = vmatprep.subr.mxu0 0.0
    %1002 = vmatpush1.msra.mxu0 0.0
    %1003 = vmatprep.subr.mxu0 0.0
    %1004 = vmatpush1.msra.mxu0 0.0
    %1005 = vmatprep.subr.mxu0 0.0
    %1006 = vmatpush1.msra.mxu0 0.0
    %1007 = vmatprep.subr.mxu0 0.0
    %1008 = vmatpush1.msra.mxu0 0.0
    %1009 = vmatprep.subr.mxu0 0.0
    %1010 = vmatpush1.msra.mxu0 0.0
    %1011 = vmatprep.subr.mxu0 0.0
    %1012 = vmatpush1.msra.mxu0 0.0
    %1013 = vmatprep.subr.mxu0 0.0
    %1014 = vmatpush1.msra.mxu0 0.0
    %1015 = vmatprep.subr.mxu0 0.0
    %1016 = vmatpush1.msra.mxu0 0.0
    %1017 = vmatprep.subr.mxu0 0.0
    %1018 = vmatpush1.msra.mxu0 0.0
    %1019 = vmatprep.subr.mxu0 0.0
    %1020 = vmatpush1.msra.mxu0 0.0
    %1021 = vmatprep.subr.mxu0 0.0
    %1022 = vmatpush1.msra.mxu0 0.0
    %1023 = vmatprep.subr.mxu0 0.0
    %1024 = vmatpush1.msra.mxu0 0.0
    %1025 = vmatprep.subr.mxu0 0.0
    %1026 = vmatpush1.msra.mxu0 0.0
    %1027 = vmatprep.subr.mxu0 0.0
    %1028 = vmatpush1.msra.mxu0 0.0
    %1029 = vmatprep.subr.mxu0 0.0
    %1030 = vmatpush1.msra.mxu0 0.0
    %1031 = vmatprep.subr.mxu0 0.0
    %1032 = vmatpush1.msra.mxu0 0.0
    %1033 = vmatprep.subr.mxu0 0.0
    %1034 = vmatpush1.msra.mxu0 0.0
    %1035 = vmatprep.subr.mxu0 0.0
    %1036 = vmatpush1.msra.mxu0 0.0
    %1037 = vmatprep.subr.mxu0 0.0
    %1038 = vmatpush1.msra.mxu0 0.0
    %1039 = vmatprep.subr.mxu0 0.0
    %1040 = vmatpush1.msra.mxu0 0.0
    %1041 = vmatprep.mubr.f32.mxu0 0.0
    %v1042 = vand.u32 %v64, 4294901760
    %1043 = vmatmul.mubr.f32.gmra.mrb[0].mxu0 %v1042
    %v1044 = vpop.f32.mrb[0].mxu0
    %v1045 = vadd.f32 %v970, %v1044
    %v1046 = vpop.f32.mrb[0].mxu0
    %1047 = vdwg.mxu0
    %v1048 = vmax.f32 %v1045, 0.0
    %v1049 = vld [vmem:[%s4] sm:$0xff]
    %v1050 = vld [vmem:[%s4 + $0x8] sm:$0xff]
    %v1051 = vld [vmem:[%s5] sm:$0x1]
    %v1053 = vlaneseq
    %v1054 = vshrl.u32 %v1053, 7
    %v1055 = vsub.s32 0, %v1054
    %v1056 = vrot.slane %v1051, %v1055
    %vm1058 = vcmask 130048
    %v1060 = vsel %vm1058, %v551, 0
    %1062 = vmatprep.subr.mxu0 0.0
    %v1063 = vand.u32 %v1049, 4294901760
    %1064 = vmatpush1.msra.mxu0 %v1063
    %1065 = vmatprep.subr.mxu0 0.0
    %v1066 = vand.u32 %v1050, 4294901760
    %1067 = vmatpush1.msra.mxu0 %v1066
    %1068 = vmatprep.subr.mxu0 0.0
    %1069 = vmatpush1.msra.mxu0 0.0
    %1070 = vmatprep.subr.mxu0 0.0
    %1071 = vmatpush1.msra.mxu0 0.0
    %1072 = vmatprep.subr.mxu0 0.0
    %1073 = vmatpush1.msra.mxu0 0.0
    %1074 = vmatprep.subr.mxu0 0.0
    %1075 = vmatpush1.msra.mxu0 0.0
    %1076 = vmatprep.subr.mxu0 0.0
    %1077 = vmatpush1.msra.mxu0 0.0
    %1078 = vmatprep.subr.mxu0 0.0
    %1079 = vmatpush1.msra.mxu0 0.0
    %1080 = vmatprep.subr.mxu0 0.0
    %1081 = vmatpush1.msra.mxu0 0.0
    %1082 = vmatprep.subr.mxu0 0.0
    %1083 = vmatpush1.msra.mxu0 0.0
    %1084 = vmatprep.subr.mxu0 0.0
    %1085 = vmatpush1.msra.mxu0 0.0
    %1086 = vmatprep.subr.mxu0 0.0
    %1087 = vmatpush1.msra.mxu0 0.0
    %1088 = vmatprep.subr.mxu0 0.0
    %1089 = vmatpush1.msra.mxu0 0.0
    %1090 = vmatprep.subr.mxu0 0.0
    %1091 = vmatpush1.msra.mxu0 0.0
    %1092 = vmatprep.subr.mxu0 0.0
    %1093 = vmatpush1.msra.mxu0 0.0
    %1094 = vmatprep.subr.mxu0 0.0
    %1095 = vmatpush1.msra.mxu0 0.0
    %1096 = vmatprep.subr.mxu0 0.0
    %1097 = vmatpush1.msra.mxu0 0.0
    %1098 = vmatprep.subr.mxu0 0.0
    %1099 = vmatpush1.msra.mxu0 0.0
    %1100 = vmatprep.subr.mxu0 0.0
    %1101 = vmatpush1.msra.mxu0 0.0
    %1102 = vmatprep.subr.mxu0 0.0
    %1103 = vmatpush1.msra.mxu0 0.0
    %1104 = vmatprep.subr.mxu0 0.0
    %1105 = vmatpush1.msra.mxu0 0.0
    %1106 = vmatprep.subr.mxu0 0.0
    %1107 = vmatpush1.msra.mxu0 0.0
    %1108 = vmatprep.subr.mxu0 0.0
    %1109 = vmatpush1.msra.mxu0 0.0
    %1110 = vmatprep.subr.mxu0 0.0
    %1111 = vmatpush1.msra.mxu0 0.0
    %1112 = vmatprep.subr.mxu0 0.0
    %1113 = vmatpush1.msra.mxu0 0.0
    %1114 = vmatprep.subr.mxu0 0.0
    %1115 = vmatpush1.msra.mxu0 0.0
    %1116 = vmatprep.subr.mxu0 0.0
    %1117 = vmatpush1.msra.mxu0 0.0
    %1118 = vmatprep.subr.mxu0 0.0
    %1119 = vmatpush1.msra.mxu0 0.0
    %1120 = vmatprep.subr.mxu0 0.0
    %1121 = vmatpush1.msra.mxu0 0.0
    %1122 = vmatprep.subr.mxu0 0.0
    %1123 = vmatpush1.msra.mxu0 0.0
    %1124 = vmatprep.subr.mxu0 0.0
    %1125 = vmatpush1.msra.mxu0 0.0
    %1126 = vmatprep.subr.mxu0 0.0
    %1127 = vmatpush1.msra.mxu0 0.0
    %1128 = vmatprep.mubr.f32.mxu0 0.0
    %v1129 = vand.u32 %v1060, 4294901760
    %v1130 = vsub.f32 %v1060, %v1129
    %v1131 = vand.u32 %v1130, 4294901760
    %v1132 = vsub.f32 %v1130, %v1131
    %v1133 = vand.u32 %v1132, 4294901760
    %1134 = vmatmul.mubr.f32.gmra.mrb[0].mxu0 %v1133
    %v1135 = vpop.f32.mrb[0].mxu0
    %v1136 = vadd.f32 %v1056, %v1135
    %v1137 = vpop.f32.mrb[0].mxu0
    %1138 = vdwg.mxu0
    %1139 = vmatprep.subr.mxu0 0.0
    %v1140 = vand.u32 %v1049, 4294901760
    %v1141 = vsub.f32 %v1049, %v1140
    %v1142 = vand.u32 %v1141, 4294901760
    %v1143 = vsub.f32 %v1141, %v1142
    %v1144 = vand.u32 %v1143, 4294901760
    %1145 = vmatpush1.msra.mxu0 %v1144
    %1146 = vmatprep.subr.mxu0 0.0
    %v1147 = vand.u32 %v1050, 4294901760
    %v1148 = vsub.f32 %v1050, %v1147
    %v1149 = vand.u32 %v1148, 4294901760
    %v1150 = vsub.f32 %v1148, %v1149
    %v1151 = vand.u32 %v1150, 4294901760
    %1152 = vmatpush1.msra.mxu0 %v1151
    %1153 = vmatprep.subr.mxu0 0.0
    %1154 = vmatpush1.msra.mxu0 0.0
    %1155 = vmatprep.subr.mxu0 0.0
    %1156 = vmatpush1.msra.mxu0 0.0
    %1157 = vmatprep.subr.mxu0 0.0
    %1158 = vmatpush1.msra.mxu0 0.0
    %1159 = vmatprep.subr.mxu0 0.0
    %1160 = vmatpush1.msra.mxu0 0.0
    %1161 = vmatprep.subr.mxu0 0.0
    %1162 = vmatpush1.msra.mxu0 0.0
    %1163 = vmatprep.subr.mxu0 0.0
    %1164 = vmatpush1.msra.mxu0 0.0
    %1165 = vmatprep.subr.mxu0 0.0
    %1166 = vmatpush1.msra.mxu0 0.0
    %1167 = vmatprep.subr.mxu0 0.0
    %1168 = vmatpush1.msra.mxu0 0.0
    %1169 = vmatprep.subr.mxu0 0.0
    %1170 = vmatpush1.msra.mxu0 0.0
    %1171 = vmatprep.subr.mxu0 0.0
    %1172 = vmatpush1.msra.mxu0 0.0
    %1173 = vmatprep.subr.mxu0 0.0
    %1174 = vmatpush1.msra.mxu0 0.0
    %1175 = vmatprep.subr.mxu0 0.0
    %1176 = vmatpush1.msra.mxu0 0.0
    %1177 = vmatprep.subr.mxu0 0.0
    %1178 = vmatpush1.msra.mxu0 0.0
    %1179 = vmatprep.subr.mxu0 0.0
    %1180 = vmatpush1.msra.mxu0 0.0
    %1181 = vmatprep.subr.mxu0 0.0
    %1182 = vmatpush1.msra.mxu0 0.0
    %1183 = vmatprep.subr.mxu0 0.0
    %1184 = vmatpush1.msra.mxu0 0.0
    %1185 = vmatprep.subr.mxu0 0.0
    %1186 = vmatpush1.msra.mxu0 0.0
    %1187 = vmatprep.subr.mxu0 0.0
    %1188 = vmatpush1.msra.mxu0 0.0
    %1189 = vmatprep.subr.mxu0 0.0
    %1190 = vmatpush1.msra.mxu0 0.0
    %1191 = vmatprep.subr.mxu0 0.0
    %1192 = vmatpush1.msra.mxu0 0.0
    %1193 = vmatprep.subr.mxu0 0.0
    %1194 = vmatpush1.msra.mxu0 0.0
    %1195 = vmatprep.subr.mxu0 0.0
    %1196 = vmatpush1.msra.mxu0 0.0
    %1197 = vmatprep.subr.mxu0 0.0
    %1198 = vmatpush1.msra.mxu0 0.0
    %1199 = vmatprep.subr.mxu0 0.0
    %1200 = vmatpush1.msra.mxu0 0.0
    %1201 = vmatprep.subr.mxu0 0.0
    %1202 = vmatpush1.msra.mxu0 0.0
    %1203 = vmatprep.subr.mxu0 0.0
    %1204 = vmatpush1.msra.mxu0 0.0
    %1205 = vmatprep.subr.mxu0 0.0
    %1206 = vmatpush1.msra.mxu0 0.0
    %1207 = vmatprep.subr.mxu0 0.0
    %1208 = vmatpush1.msra.mxu0 0.0
    %1209 = vmatprep.subr.mxu0 0.0
    %1210 = vmatpush1.msra.mxu0 0.0
    %1211 = vmatprep.subr.mxu0 0.0
    %1212 = vmatpush1.msra.mxu0 0.0
    %1213 = vmatprep.mubr.f32.mxu0 0.0
    %v1214 = vand.u32 %v1060, 4294901760
    %1215 = vmatmul.mubr.f32.gmra.mrb[0].mxu0 %v1214
    %v1216 = vpop.f32.mrb[0].mxu0
    %v1217 = vadd.f32 %v1136, %v1216
    %v1218 = vpop.f32.mrb[0].mxu0
    %1219 = vdwg.mxu0
    %1220 = vmatprep.subr.mxu0 0.0
    %v1221 = vand.u32 %v1049, 4294901760
    %v1222 = vsub.f32 %v1049, %v1221
    %1223 = vmatpush1.msra.mxu0 %v1222
    %1224 = vmatprep.subr.mxu0 0.0
    %v1225 = vand.u32 %v1050, 4294901760
    %v1226 = vsub.f32 %v1050, %v1225
    %1227 = vmatpush1.msra.mxu0 %v1226
    %1228 = vmatprep.subr.mxu0 0.0
    %1229 = vmatpush1.msra.mxu0 0.0
    %1230 = vmatprep.subr.mxu0 0.0
    %1231 = vmatpush1.msra.mxu0 0.0
    %1232 = vmatprep.subr.mxu0 0.0
    %1233 = vmatpush1.msra.mxu0 0.0
    %1234 = vmatprep.subr.mxu0 0.0
    %1235 = vmatpush1.msra.mxu0 0.0
    %1236 = vmatprep.subr.mxu0 0.0
    %1237 = vmatpush1.msra.mxu0 0.0
    %1238 = vmatprep.subr.mxu0 0.0
    %1239 = vmatpush1.msra.mxu0 0.0
    %1240 = vmatprep.subr.mxu0 0.0
    %1241 = vmatpush1.msra.mxu0 0.0
    %1242 = vmatprep.subr.mxu0 0.0
    %1243 = vmatpush1.msra.mxu0 0.0
    %1244 = vmatprep.subr.mxu0 0.0
    %1245 = vmatpush1.msra.mxu0 0.0
    %1246 = vmatprep.subr.mxu0 0.0
    %1247 = vmatpush1.msra.mxu0 0.0
    %1248 = vmatprep.subr.mxu0 0.0
    %1249 = vmatpush1.msra.mxu0 0.0
    %1250 = vmatprep.subr.mxu0 0.0
    %1251 = vmatpush1.msra.mxu0 0.0
    %1252 = vmatprep.subr.mxu0 0.0
    %1253 = vmatpush1.msra.mxu0 0.0
    %1254 = vmatprep.subr.mxu0 0.0
    %1255 = vmatpush1.msra.mxu0 0.0
    %1256 = vmatprep.subr.mxu0 0.0
    %1257 = vmatpush1.msra.mxu0 0.0
    %1258 = vmatprep.subr.mxu0 0.0
    %1259 = vmatpush1.msra.mxu0 0.0
    %1260 = vmatprep.subr.mxu0 0.0
    %1261 = vmatpush1.msra.mxu0 0.0
    %1262 = vmatprep.subr.mxu0 0.0
    %1263 = vmatpush1.msra.mxu0 0.0
    %1264 = vmatprep.subr.mxu0 0.0
    %1265 = vmatpush1.msra.mxu0 0.0
    %1266 = vmatprep.subr.mxu0 0.0
    %1267 = vmatpush1.msra.mxu0 0.0
    %1268 = vmatprep.subr.mxu0 0.0
    %1269 = vmatpush1.msra.mxu0 0.0
    %1270 = vmatprep.subr.mxu0 0.0
    %1271 = vmatpush1.msra.mxu0 0.0
    %1272 = vmatprep.subr.mxu0 0.0
    %1273 = vmatpush1.msra.mxu0 0.0
    %1274 = vmatprep.subr.mxu0 0.0
    %1275 = vmatpush1.msra.mxu0 0.0
    %1276 = vmatprep.subr.mxu0 0.0
    %1277 = vmatpush1.msra.mxu0 0.0
    %1278 = vmatprep.subr.mxu0 0.0
    %1279 = vmatpush1.msra.mxu0 0.0
    %1280 = vmatprep.subr.mxu0 0.0
    %1281 = vmatpush1.msra.mxu0 0.0
    %1282 = vmatprep.subr.mxu0 0.0
    %1283 = vmatpush1.msra.mxu0 0.0
    %1284 = vmatprep.subr.mxu0 0.0
    %1285 = vmatpush1.msra.mxu0 0.0
    %1286 = vmatprep.subr.mxu0 0.0
    %1287 = vmatpush1.msra.mxu0 0.0
    %1288 = vmatprep.mubr.f32.mxu0 0.0
    %v1289 = vand.u32 %v1060, 4294901760
    %v1290 = vsub.f32 %v1060, %v1289
    %1291 = vmatmul.mubr.f32.gmra.mrb[0].mxu0 %v1290
    %v1292 = vpop.f32.mrb[0].mxu0
    %v1293 = vadd.f32 %v1217, %v1292
    %v1294 = vpop.f32.mrb[0].mxu0
    %1295 = vdwg.mxu0
    %1296 = vmatprep.subr.mxu0 0.0
    %v1297 = vand.u32 %v1049, 4294901760
    %1298 = vmatpush1.msra.mxu0 %v1297
    %1299 = vmatprep.subr.mxu0 0.0
    %v1300 = vand.u32 %v1050, 4294901760
    %1301 = vmatpush1.msra.mxu0 %v1300
    %1302 = vmatprep.subr.mxu0 0.0
    %1303 = vmatpush1.msra.mxu0 0.0
    %1304 = vmatprep.subr.mxu0 0.0
    %1305 = vmatpush1.msra.mxu0 0.0
    %1306 = vmatprep.subr.mxu0 0.0
    %1307 = vmatpush1.msra.mxu0 0.0
    %1308 = vmatprep.subr.mxu0 0.0
    %1309 = vmatpush1.msra.mxu0 0.0
    %1310 = vmatprep.subr.mxu0 0.0
    %1311 = vmatpush1.msra.mxu0 0.0
    %1312 = vmatprep.subr.mxu0 0.0
    %1313 = vmatpush1.msra.mxu0 0.0
    %1314 = vmatprep.subr.mxu0 0.0
    %1315 = vmatpush1.msra.mxu0 0.0
    %1316 = vmatprep.subr.mxu0 0.0
    %1317 = vmatpush1.msra.mxu0 0.0
    %1318 = vmatprep.subr.mxu0 0.0
    %1319 = vmatpush1.msra.mxu0 0.0
    %1320 = vmatprep.subr.mxu0 0.0
    %1321 = vmatpush1.msra.mxu0 0.0
    %1322 = vmatprep.subr.mxu0 0.0
    %1323 = vmatpush1.msra.mxu0 0.0
    %1324 = vmatprep.subr.mxu0 0.0
    %1325 = vmatpush1.msra.mxu0 0.0
    %1326 = vmatprep.subr.mxu0 0.0
    %1327 = vmatpush1.msra.mxu0 0.0
    %1328 = vmatprep.subr.mxu0 0.0
    %1329 = vmatpush1.msra.mxu0 0.0
    %1330 = vmatprep.subr.mxu0 0.0
    %1331 = vmatpush1.msra.mxu0 0.0
    %1332 = vmatprep.subr.mxu0 0.0
    %1333 = vmatpush1.msra.mxu0 0.0
    %1334 = vmatprep.subr.mxu0 0.0
    %1335 = vmatpush1.msra.mxu0 0.0
    %1336 = vmatprep.subr.mxu0 0.0
    %1337 = vmatpush1.msra.mxu0 0.0
    %1338 = vmatprep.subr.mxu0 0.0
    %1339 = vmatpush1.msra.mxu0 0.0
    %1340 = vmatprep.subr.mxu0 0.0
    %1341 = vmatpush1.msra.mxu0 0.0
    %1342 = vmatprep.subr.mxu0 0.0
    %1343 = vmatpush1.msra.mxu0 0.0
    %1344 = vmatprep.subr.mxu0 0.0
    %1345 = vmatpush1.msra.mxu0 0.0
    %1346 = vmatprep.subr.mxu0 0.0
    %1347 = vmatpush1.msra.mxu0 0.0
    %1348 = vmatprep.subr.mxu0 0.0
    %1349 = vmatpush1.msra.mxu0 0.0
    %1350 = vmatprep.subr.mxu0 0.0
    %1351 = vmatpush1.msra.mxu0 0.0
    %1352 = vmatprep.subr.mxu0 0.0
    %1353 = vmatpush1.msra.mxu0 0.0
    %1354 = vmatprep.subr.mxu0 0.0
    %1355 = vmatpush1.msra.mxu0 0.0
    %1356 = vmatprep.subr.mxu0 0.0
    %1357 = vmatpush1.msra.mxu0 0.0
    %1358 = vmatprep.subr.mxu0 0.0
    %1359 = vmatpush1.msra.mxu0 0.0
    %1360 = vmatprep.subr.mxu0 0.0
    %1361 = vmatpush1.msra.mxu0 0.0
    %1362 = vmatprep.mubr.f32.mxu0 0.0
    %v1363 = vand.u32 %v1060, 4294901760
    %v1364 = vsub.f32 %v1060, %v1363
    %v1365 = vand.u32 %v1364, 4294901760
    %1366 = vmatmul.mubr.f32.gmra.mrb[0].mxu0 %v1365
    %v1367 = vpop.f32.mrb[0].mxu0
    %v1368 = vadd.f32 %v1293, %v1367
    %v1369 = vpop.f32.mrb[0].mxu0
    %1370 = vdwg.mxu0
    %1371 = vmatprep.subr.mxu0 0.0
    %v1372 = vand.u32 %v1049, 4294901760
    %v1373 = vsub.f32 %v1049, %v1372
    %v1374 = vand.u32 %v1373, 4294901760
    %1375 = vmatpush1.msra.mxu0 %v1374
    %1376 = vmatprep.subr.mxu0 0.0
    %v1377 = vand.u32 %v1050, 4294901760
    %v1378 = vsub.f32 %v1050, %v1377
    %v1379 = vand.u32 %v1378, 4294901760
    %1380 = vmatpush1.msra.mxu0 %v1379
    %1381 = vmatprep.subr.mxu0 0.0
    %1382 = vmatpush1.msra.mxu0 0.0
    %1383 = vmatprep.subr.mxu0 0.0
    %1384 = vmatpush1.msra.mxu0 0.0
    %1385 = vmatprep.subr.mxu0 0.0
    %1386 = vmatpush1.msra.mxu0 0.0
    %1387 = vmatprep.subr.mxu0 0.0
    %1388 = vmatpush1.msra.mxu0 0.0
    %1389 = vmatprep.subr.mxu0 0.0
    %1390 = vmatpush1.msra.mxu0 0.0
    %1391 = vmatprep.subr.mxu0 0.0
    %1392 = vmatpush1.msra.mxu0 0.0
    %1393 = vmatprep.subr.mxu0 0.0
    %1394 = vmatpush1.msra.mxu0 0.0
    %1395 = vmatprep.subr.mxu0 0.0
    %1396 = vmatpush1.msra.mxu0 0.0
    %1397 = vmatprep.subr.mxu0 0.0
    %1398 = vmatpush1.msra.mxu0 0.0
    %1399 = vmatprep.subr.mxu0 0.0
    %1400 = vmatpush1.msra.mxu0 0.0
    %1401 = vmatprep.subr.mxu0 0.0
    %1402 = vmatpush1.msra.mxu0 0.0
    %1403 = vmatprep.subr.mxu0 0.0
    %1404 = vmatpush1.msra.mxu0 0.0
    %1405 = vmatprep.subr.mxu0 0.0
    %1406 = vmatpush1.msra.mxu0 0.0
    %1407 = vmatprep.subr.mxu0 0.0
    %1408 = vmatpush1.msra.mxu0 0.0
    %1409 = vmatprep.subr.mxu0 0.0
    %1410 = vmatpush1.msra.mxu0 0.0
    %1411 = vmatprep.subr.mxu0 0.0
    %1412 = vmatpush1.msra.mxu0 0.0
    %1413 = vmatprep.subr.mxu0 0.0
    %1414 = vmatpush1.msra.mxu0 0.0
    %1415 = vmatprep.subr.mxu0 0.0
    %1416 = vmatpush1.msra.mxu0 0.0
    %1417 = vmatprep.subr.mxu0 0.0
    %1418 = vmatpush1.msra.mxu0 0.0
    %1419 = vmatprep.subr.mxu0 0.0
    %1420 = vmatpush1.msra.mxu0 0.0
    %1421 = vmatprep.subr.mxu0 0.0
    %1422 = vmatpush1.msra.mxu0 0.0
    %1423 = vmatprep.subr.mxu0 0.0
    %1424 = vmatpush1.msra.mxu0 0.0
    %1425 = vmatprep.subr.mxu0 0.0
    %1426 = vmatpush1.msra.mxu0 0.0
    %1427 = vmatprep.subr.mxu0 0.0
    %1428 = vmatpush1.msra.mxu0 0.0
    %1429 = vmatprep.subr.mxu0 0.0
    %1430 = vmatpush1.msra.mxu0 0.0
    %1431 = vmatprep.subr.mxu0 0.0
    %1432 = vmatpush1.msra.mxu0 0.0
    %1433 = vmatprep.subr.mxu0 0.0
    %1434 = vmatpush1.msra.mxu0 0.0
    %1435 = vmatprep.subr.mxu0 0.0
    %1436 = vmatpush1.msra.mxu0 0.0
    %1437 = vmatprep.subr.mxu0 0.0
    %1438 = vmatpush1.msra.mxu0 0.0
    %1439 = vmatprep.subr.mxu0 0.0
    %1440 = vmatpush1.msra.mxu0 0.0
    %1441 = vmatprep.mubr.f32.mxu0 0.0
    %v1442 = vand.u32 %v1060, 4294901760
    %1443 = vmatmul.mubr.f32.gmra.mrb[0].mxu0 %v1442
    %v1444 = vpop.f32.mrb[0].mxu0
    %v1445 = vadd.f32 %v1368, %v1444
    %v1446 = vpop.f32.mrb[0].mxu0
    %1447 = vdwg.mxu0
    %1448 = vmatprep.subr.mxu0 0.0
    %v1449 = vand.u32 %v1049, 4294901760
    %1450 = vmatpush1.msra.mxu0 %v1449
    %1451 = vmatprep.subr.mxu0 0.0
    %v1452 = vand.u32 %v1050, 4294901760
    %1453 = vmatpush1.msra.mxu0 %v1452
    %1454 = vmatprep.subr.mxu0 0.0
    %1455 = vmatpush1.msra.mxu0 0.0
    %1456 = vmatprep.subr.mxu0 0.0
    %1457 = vmatpush1.msra.mxu0 0.0
    %1458 = vmatprep.subr.mxu0 0.0
    %1459 = vmatpush1.msra.mxu0 0.0
    %1460 = vmatprep.subr.mxu0 0.0
    %1461 = vmatpush1.msra.mxu0 0.0
    %1462 = vmatprep.subr.mxu0 0.0
    %1463 = vmatpush1.msra.mxu0 0.0
    %1464 = vmatprep.subr.mxu0 0.0
    %1465 = vmatpush1.msra.mxu0 0.0
    %1466 = vmatprep.subr.mxu0 0.0
    %1467 = vmatpush1.msra.mxu0 0.0
    %1468 = vmatprep.subr.mxu0 0.0
    %1469 = vmatpush1.msra.mxu0 0.0
    %1470 = vmatprep.subr.mxu0 0.0
    %1471 = vmatpush1.msra.mxu0 0.0
    %1472 = vmatprep.subr.mxu0 0.0
    %1473 = vmatpush1.msra.mxu0 0.0
    %1474 = vmatprep.subr.mxu0 0.0
    %1475 = vmatpush1.msra.mxu0 0.0
    %1476 = vmatprep.subr.mxu0 0.0
    %1477 = vmatpush1.msra.mxu0 0.0
    %1478 = vmatprep.subr.mxu0 0.0
    %1479 = vmatpush1.msra.mxu0 0.0
    %1480 = vmatprep.subr.mxu0 0.0
    %1481 = vmatpush1.msra.mxu0 0.0
    %1482 = vmatprep.subr.mxu0 0.0
    %1483 = vmatpush1.msra.mxu0 0.0
    %1484 = vmatprep.subr.mxu0 0.0
    %1485 = vmatpush1.msra.mxu0 0.0
    %1486 = vmatprep.subr.mxu0 0.0
    %1487 = vmatpush1.msra.mxu0 0.0
    %1488 = vmatprep.subr.mxu0 0.0
    %1489 = vmatpush1.msra.mxu0 0.0
    %1490 = vmatprep.subr.mxu0 0.0
    %1491 = vmatpush1.msra.mxu0 0.0
    %1492 = vmatprep.subr.mxu0 0.0
    %1493 = vmatpush1.msra.mxu0 0.0
    %1494 = vmatprep.subr.mxu0 0.0
    %1495 = vmatpush1.msra.mxu0 0.0
    %1496 = vmatprep.subr.mxu0 0.0
    %1497 = vmatpush1.msra.mxu0 0.0
    %1498 = vmatprep.subr.mxu0 0.0
    %1499 = vmatpush1.msra.mxu0 0.0
    %1500 = vmatprep.subr.mxu0 0.0
    %1501 = vmatpush1.msra.mxu0 0.0
    %1502 = vmatprep.subr.mxu0 0.0
    %1503 = vmatpush1.msra.mxu0 0.0
    %1504 = vmatprep.subr.mxu0 0.0
    %1505 = vmatpush1.msra.mxu0 0.0
    %1506 = vmatprep.subr.mxu0 0.0
    %1507 = vmatpush1.msra.mxu0 0.0
    %1508 = vmatprep.subr.mxu0 0.0
    %1509 = vmatpush1.msra.mxu0 0.0
    %1510 = vmatprep.subr.mxu0 0.0
    %1511 = vmatpush1.msra.mxu0 0.0
    %1512 = vmatprep.subr.mxu0 0.0
    %1513 = vmatpush1.msra.mxu0 0.0
    %1514 = vmatprep.mubr.f32.mxu0 0.0
    %v1515 = vand.u32 %v1060, 4294901760
    %1516 = vmatmul.mubr.f32.gmra.mrb[0].mxu0 %v1515
    %v1517 = vpop.f32.mrb[0].mxu0
    %v1518 = vadd.f32 %v1445, %v1517
    %v1519 = vpop.f32.mrb[0].mxu0
    %1520 = vdwg.mxu0
    %v1521 = vld [vmem:[%s8] sm:$0xff]
    %v1522 = vld [vmem:[%s8 + $0x8] sm:$0xff]
    %v1523 = vld [vmem:[%s9] sm:$0x1]
    %v1525 = vlaneseq
    %v1526 = vshrl.u32 %v1525, 7
    %v1527 = vsub.s32 0, %v1526
    %v1528 = vrot.slane %v1523, %v1527
    %v1531 = vsel %vm1058, %v1048, 0
    %1533 = vmatprep.subr.mxu0 0.0
    %v1534 = vand.u32 %v1521, 4294901760
    %1535 = vmatpush1.msra.mxu0 %v1534
    %1536 = vmatprep.subr.mxu0 0.0
    %v1537 = vand.u32 %v1522, 4294901760
    %1538 = vmatpush1.msra.mxu0 %v1537
    %1539 = vmatprep.subr.mxu0 0.0
    %1540 = vmatpush1.msra.mxu0 0.0
    %1541 = vmatprep.subr.mxu0 0.0
    %1542 = vmatpush1.msra.mxu0 0.0
    %1543 = vmatprep.subr.mxu0 0.0
    %1544 = vmatpush1.msra.mxu0 0.0
    %1545 = vmatprep.subr.mxu0 0.0
    %1546 = vmatpush1.msra.mxu0 0.0
    %1547 = vmatprep.subr.mxu0 0.0
    %1548 = vmatpush1.msra.mxu0 0.0
    %1549 = vmatprep.subr.mxu0 0.0
    %1550 = vmatpush1.msra.mxu0 0.0
    %1551 = vmatprep.subr.mxu0 0.0
    %1552 = vmatpush1.msra.mxu0 0.0
    %1553 = vmatprep.subr.mxu0 0.0
    %1554 = vmatpush1.msra.mxu0 0.0
    %1555 = vmatprep.subr.mxu0 0.0
    %1556 = vmatpush1.msra.mxu0 0.0
    %1557 = vmatprep.subr.mxu0 0.0
    %1558 = vmatpush1.msra.mxu0 0.0
    %1559 = vmatprep.subr.mxu0 0.0
    %1560 = vmatpush1.msra.mxu0 0.0
    %1561 = vmatprep.subr.mxu0 0.0
    %1562 = vmatpush1.msra.mxu0 0.0
    %1563 = vmatprep.subr.mxu0 0.0
    %1564 = vmatpush1.msra.mxu0 0.0
    %1565 = vmatprep.subr.mxu0 0.0
    %1566 = vmatpush1.msra.mxu0 0.0
    %1567 = vmatprep.subr.mxu0 0.0
    %1568 = vmatpush1.msra.mxu0 0.0
    %1569 = vmatprep.subr.mxu0 0.0
    %1570 = vmatpush1.msra.mxu0 0.0
    %1571 = vmatprep.subr.mxu0 0.0
    %1572 = vmatpush1.msra.mxu0 0.0
    %1573 = vmatprep.subr.mxu0 0.0
    %1574 = vmatpush1.msra.mxu0 0.0
    %1575 = vmatprep.subr.mxu0 0.0
    %1576 = vmatpush1.msra.mxu0 0.0
    %1577 = vmatprep.subr.mxu0 0.0
    %1578 = vmatpush1.msra.mxu0 0.0
    %1579 = vmatprep.subr.mxu0 0.0
    %1580 = vmatpush1.msra.mxu0 0.0
    %1581 = vmatprep.subr.mxu0 0.0
    %1582 = vmatpush1.msra.mxu0 0.0
    %1583 = vmatprep.subr.mxu0 0.0
    %1584 = vmatpush1.msra.mxu0 0.0
    %1585 = vmatprep.subr.mxu0 0.0
    %1586 = vmatpush1.msra.mxu0 0.0
    %1587 = vmatprep.subr.mxu0 0.0
    %1588 = vmatpush1.msra.mxu0 0.0
    %1589 = vmatprep.subr.mxu0 0.0
    %1590 = vmatpush1.msra.mxu0 0.0
    %1591 = vmatprep.subr.mxu0 0.0
    %1592 = vmatpush1.msra.mxu0 0.0
    %1593 = vmatprep.subr.mxu0 0.0
    %1594 = vmatpush1.msra.mxu0 0.0
    %1595 = vmatprep.subr.mxu0 0.0
    %1596 = vmatpush1.msra.mxu0 0.0
    %1597 = vmatprep.subr.mxu0 0.0
    %1598 = vmatpush1.msra.mxu0 0.0
    %1599 = vmatprep.mubr.f32.mxu0 0.0
    %v1600 = vand.u32 %v1531, 4294901760
    %v1601 = vsub.f32 %v1531, %v1600
    %v1602 = vand.u32 %v1601, 4294901760
    %v1603 = vsub.f32 %v1601, %v1602
    %v1604 = vand.u32 %v1603, 4294901760
    %1605 = vmatmul.mubr.f32.gmra.mrb[0].mxu0 %v1604
    %v1606 = vpop.f32.mrb[0].mxu0
    %v1607 = vadd.f32 %v1528, %v1606
    %v1608 = vpop.f32.mrb[0].mxu0
    %1609 = vdwg.mxu0
    %1610 = vmatprep.subr.mxu0 0.0
    %v1611 = vand.u32 %v1521, 4294901760
    %v1612 = vsub.f32 %v1521, %v1611
    %v1613 = vand.u32 %v1612, 4294901760
    %v1614 = vsub.f32 %v1612, %v1613
    %v1615 = vand.u32 %v1614, 4294901760
    %1616 = vmatpush1.msra.mxu0 %v1615
    %1617 = vmatprep.subr.mxu0 0.0
    %v1618 = vand.u32 %v1522, 4294901760
    %v1619 = vsub.f32 %v1522, %v1618
    %v1620 = vand.u32 %v1619, 4294901760
    %v1621 = vsub.f32 %v1619, %v1620
    %v1622 = vand.u32 %v1621, 4294901760
    %1623 = vmatpush1.msra.mxu0 %v1622
    %1624 = vmatprep.subr.mxu0 0.0
    %1625 = vmatpush1.msra.mxu0 0.0
    %1626 = vmatprep.subr.mxu0 0.0
    %1627 = vmatpush1.msra.mxu0 0.0
    %1628 = vmatprep.subr.mxu0 0.0
    %1629 = vmatpush1.msra.mxu0 0.0
    %1630 = vmatprep.subr.mxu0 0.0
    %1631 = vmatpush1.msra.mxu0 0.0
    %1632 = vmatprep.subr.mxu0 0.0
    %1633 = vmatpush1.msra.mxu0 0.0
    %1634 = vmatprep.subr.mxu0 0.0
    %1635 = vmatpush1.msra.mxu0 0.0
    %1636 = vmatprep.subr.mxu0 0.0
    %1637 = vmatpush1.msra.mxu0 0.0
    %1638 = vmatprep.subr.mxu0 0.0
    %1639 = vmatpush1.msra.mxu0 0.0
    %1640 = vmatprep.subr.mxu0 0.0
    %1641 = vmatpush1.msra.mxu0 0.0
    %1642 = vmatprep.subr.mxu0 0.0
    %1643 = vmatpush1.msra.mxu0 0.0
    %1644 = vmatprep.subr.mxu0 0.0
    %1645 = vmatpush1.msra.mxu0 0.0
    %1646 = vmatprep.subr.mxu0 0.0
    %1647 = vmatpush1.msra.mxu0 0.0
    %1648 = vmatprep.subr.mxu0 0.0
    %1649 = vmatpush1.msra.mxu0 0.0
    %1650 = vmatprep.subr.mxu0 0.0
    %1651 = vmatpush1.msra.mxu0 0.0
    %1652 = vmatprep.subr.mxu0 0.0
    %1653 = vmatpush1.msra.mxu0 0.0
    %1654 = vmatprep.subr.mxu0 0.0
    %1655 = vmatpush1.msra.mxu0 0.0
    %1656 = vmatprep.subr.mxu0 0.0
    %1657 = vmatpush1.msra.mxu0 0.0
    %1658 = vmatprep.subr.mxu0 0.0
    %1659 = vmatpush1.msra.mxu0 0.0
    %1660 = vmatprep.subr.mxu0 0.0
    %1661 = vmatpush1.msra.mxu0 0.0
    %1662 = vmatprep.subr.mxu0 0.0
    %1663 = vmatpush1.msra.mxu0 0.0
    %1664 = vmatprep.subr.mxu0 0.0
    %1665 = vmatpush1.msra.mxu0 0.0
    %1666 = vmatprep.subr.mxu0 0.0
    %1667 = vmatpush1.msra.mxu0 0.0
    %1668 = vmatprep.subr.mxu0 0.0
    %1669 = vmatpush1.msra.mxu0 0.0
    %1670 = vmatprep.subr.mxu0 0.0
    %1671 = vmatpush1.msra.mxu0 0.0
    %1672 = vmatprep.subr.mxu0 0.0
    %1673 = vmatpush1.msra.mxu0 0.0
    %1674 = vmatprep.subr.mxu0 0.0
    %1675 = vmatpush1.msra.mxu0 0.0
    %1676 = vmatprep.subr.mxu0 0.0
    %1677 = vmatpush1.msra.mxu0 0.0
    %1678 = vmatprep.subr.mxu0 0.0
    %1679 = vmatpush1.msra.mxu0 0.0
    %1680 = vmatprep.subr.mxu0 0.0
    %1681 = vmatpush1.msra.mxu0 0.0
    %1682 = vmatprep.subr.mxu0 0.0
    %1683 = vmatpush1.msra.mxu0 0.0
    %1684 = vmatprep.mubr.f32.mxu0 0.0
    %v1685 = vand.u32 %v1531, 4294901760
    %1686 = vmatmul.mubr.f32.gmra.mrb[0].mxu0 %v1685
    %v1687 = vpop.f32.mrb[0].mxu0
    %v1688 = vadd.f32 %v1607, %v1687
    %v1689 = vpop.f32.mrb[0].mxu0
    %1690 = vdwg.mxu0
    %1691 = vmatprep.subr.mxu0 0.0
    %v1692 = vand.u32 %v1521, 4294901760
    %v1693 = vsub.f32 %v1521, %v1692
    %1694 = vmatpush1.msra.mxu0 %v1693
    %1695 = vmatprep.subr.mxu0 0.0
    %v1696 = vand.u32 %v1522, 4294901760
    %v1697 = vsub.f32 %v1522, %v1696
    %1698 = vmatpush1.msra.mxu0 %v1697
    %1699 = vmatprep.subr.mxu0 0.0
    %1700 = vmatpush1.msra.mxu0 0.0
    %1701 = vmatprep.subr.mxu0 0.0
    %1702 = vmatpush1.msra.mxu0 0.0
    %1703 = vmatprep.subr.mxu0 0.0
    %1704 = vmatpush1.msra.mxu0 0.0
    %1705 = vmatprep.subr.mxu0 0.0
    %1706 = vmatpush1.msra.mxu0 0.0
    %1707 = vmatprep.subr.mxu0 0.0
    %1708 = vmatpush1.msra.mxu0 0.0
    %1709 = vmatprep.subr.mxu0 0.0
    %1710 = vmatpush1.msra.mxu0 0.0
    %1711 = vmatprep.subr.mxu0 0.0
    %1712 = vmatpush1.msra.mxu0 0.0
    %1713 = vmatprep.subr.mxu0 0.0
    %1714 = vmatpush1.msra.mxu0 0.0
    %1715 = vmatprep.subr.mxu0 0.0
    %1716 = vmatpush1.msra.mxu0 0.0
    %1717 = vmatprep.subr.mxu0 0.0
    %1718 = vmatpush1.msra.mxu0 0.0
    %1719 = vmatprep.subr.mxu0 0.0
    %1720 = vmatpush1.msra.mxu0 0.0
    %1721 = vmatprep.subr.mxu0 0.0
    %1722 = vmatpush1.msra.mxu0 0.0
    %1723 = vmatprep.subr.mxu0 0.0
    %1724 = vmatpush1.msra.mxu0 0.0
    %1725 = vmatprep.subr.mxu0 0.0
    %1726 = vmatpush1.msra.mxu0 0.0
    %1727 = vmatprep.subr.mxu0 0.0
    %1728 = vmatpush1.msra.mxu0 0.0
    %1729 = vmatprep.subr.mxu0 0.0
    %1730 = vmatpush1.msra.mxu0 0.0
    %1731 = vmatprep.subr.mxu0 0.0
    %1732 = vmatpush1.msra.mxu0 0.0
    %1733 = vmatprep.subr.mxu0 0.0
    %1734 = vmatpush1.msra.mxu0 0.0
    %1735 = vmatprep.subr.mxu0 0.0
    %1736 = vmatpush1.msra.mxu0 0.0
    %1737 = vmatprep.subr.mxu0 0.0
    %1738 = vmatpush1.msra.mxu0 0.0
    %1739 = vmatprep.subr.mxu0 0.0
    %1740 = vmatpush1.msra.mxu0 0.0
    %1741 = vmatprep.subr.mxu0 0.0
    %1742 = vmatpush1.msra.mxu0 0.0
    %1743 = vmatprep.subr.mxu0 0.0
    %1744 = vmatpush1.msra.mxu0 0.0
    %1745 = vmatprep.subr.mxu0 0.0
    %1746 = vmatpush1.msra.mxu0 0.0
    %1747 = vmatprep.subr.mxu0 0.0
    %1748 = vmatpush1.msra.mxu0 0.0
    %1749 = vmatprep.subr.mxu0 0.0
    %1750 = vmatpush1.msra.mxu0 0.0
    %1751 = vmatprep.subr.mxu0 0.0
    %1752 = vmatpush1.msra.mxu0 0.0
    %1753 = vmatprep.subr.mxu0 0.0
    %1754 = vmatpush1.msra.mxu0 0.0
    %1755 = vmatprep.subr.mxu0 0.0
    %1756 = vmatpush1.msra.mxu0 0.0
    %1757 = vmatprep.subr.mxu0 0.0
    %1758 = vmatpush1.msra.mxu0 0.0
    %1759 = vmatprep.mubr.f32.mxu0 0.0
    %v1760 = vand.u32 %v1531, 4294901760
    %v1761 = vsub.f32 %v1531, %v1760
    %1762 = vmatmul.mubr.f32.gmra.mrb[0].mxu0 %v1761
    %v1763 = vpop.f32.mrb[0].mxu0
    %v1764 = vadd.f32 %v1688, %v1763
    %v1765 = vpop.f32.mrb[0].mxu0
    %1766 = vdwg.mxu0
    %1767 = vmatprep.subr.mxu0 0.0
    %v1768 = vand.u32 %v1521, 4294901760
    %1769 = vmatpush1.msra.mxu0 %v1768
    %1770 = vmatprep.subr.mxu0 0.0
    %v1771 = vand.u32 %v1522, 4294901760
    %1772 = vmatpush1.msra.mxu0 %v1771
    %1773 = vmatprep.subr.mxu0 0.0
    %1774 = vmatpush1.msra.mxu0 0.0
    %1775 = vmatprep.subr.mxu0 0.0
    %1776 = vmatpush1.msra.mxu0 0.0
    %1777 = vmatprep.subr.mxu0 0.0
    %1778 = vmatpush1.msra.mxu0 0.0
    %1779 = vmatprep.subr.mxu0 0.0
    %1780 = vmatpush1.msra.mxu0 0.0
    %1781 = vmatprep.subr.mxu0 0.0
    %1782 = vmatpush1.msra.mxu0 0.0
    %1783 = vmatprep.subr.mxu0 0.0
    %1784 = vmatpush1.msra.mxu0 0.0
    %1785 = vmatprep.subr.mxu0 0.0
    %1786 = vmatpush1.msra.mxu0 0.0
    %1787 = vmatprep.subr.mxu0 0.0
    %1788 = vmatpush1.msra.mxu0 0.0
    %1789 = vmatprep.subr.mxu0 0.0
    %1790 = vmatpush1.msra.mxu0 0.0
    %1791 = vmatprep.subr.mxu0 0.0
    %1792 = vmatpush1.msra.mxu0 0.0
    %1793 = vmatprep.subr.mxu0 0.0
    %1794 = vmatpush1.msra.mxu0 0.0
    %1795 = vmatprep.subr.mxu0 0.0
    %1796 = vmatpush1.msra.mxu0 0.0
    %1797 = vmatprep.subr.mxu0 0.0
    %1798 = vmatpush1.msra.mxu0 0.0
    %1799 = vmatprep.subr.mxu0 0.0
    %1800 = vmatpush1.msra.mxu0 0.0
    %1801 = vmatprep.subr.mxu0 0.0
    %1802 = vmatpush1.msra.mxu0 0.0
    %1803 = vmatprep.subr.mxu0 0.0
    %1804 = vmatpush1.msra.mxu0 0.0
    %1805 = vmatprep.subr.mxu0 0.0
    %1806 = vmatpush1.msra.mxu0 0.0
    %1807 = vmatprep.subr.mxu0 0.0
    %1808 = vmatpush1.msra.mxu0 0.0
    %1809 = vmatprep.subr.mxu0 0.0
    %1810 = vmatpush1.msra.mxu0 0.0
    %1811 = vmatprep.subr.mxu0 0.0
    %1812 = vmatpush1.msra.mxu0 0.0
    %1813 = vmatprep.subr.mxu0 0.0
    %1814 = vmatpush1.msra.mxu0 0.0
    %1815 = vmatprep.subr.mxu0 0.0
    %1816 = vmatpush1.msra.mxu0 0.0
    %1817 = vmatprep.subr.mxu0 0.0
    %1818 = vmatpush1.msra.mxu0 0.0
    %1819 = vmatprep.subr.mxu0 0.0
    %1820 = vmatpush1.msra.mxu0 0.0
    %1821 = vmatprep.subr.mxu0 0.0
    %1822 = vmatpush1.msra.mxu0 0.0
    %1823 = vmatprep.subr.mxu0 0.0
    %1824 = vmatpush1.msra.mxu0 0.0
    %1825 = vmatprep.subr.mxu0 0.0
    %1826 = vmatpush1.msra.mxu0 0.0
    %1827 = vmatprep.subr.mxu0 0.0
    %1828 = vmatpush1.msra.mxu0 0.0
    %1829 = vmatprep.subr.mxu0 0.0
    %1830 = vmatpush1.msra.mxu0 0.0
    %1831 = vmatprep.subr.mxu0 0.0
    %1832 = vmatpush1.msra.mxu0 0.0
    %1833 = vmatprep.mubr.f32.mxu0 0.0
    %v1834 = vand.u32 %v1531, 4294901760
    %v1835 = vsub.f32 %v1531, %v1834
    %v1836 = vand.u32 %v1835, 4294901760
    %1837 = vmatmul.mubr.f32.gmra.mrb[0].mxu0 %v1836
    %v1838 = vpop.f32.mrb[0].mxu0
    %v1839 = vadd.f32 %v1764, %v1838
    %v1840 = vpop.f32.mrb[0].mxu0
    %1841 = vdwg.mxu0
    %1842 = vmatprep.subr.mxu0 0.0
    %v1843 = vand.u32 %v1521, 4294901760
    %v1844 = vsub.f32 %v1521, %v1843
    %v1845 = vand.u32 %v1844, 4294901760
    %1846 = vmatpush1.msra.mxu0 %v1845
    %1847 = vmatprep.subr.mxu0 0.0
    %v1848 = vand.u32 %v1522, 4294901760
    %v1849 = vsub.f32 %v1522, %v1848
    %v1850 = vand.u32 %v1849, 4294901760
    %1851 = vmatpush1.msra.mxu0 %v1850
    %1852 = vmatprep.subr.mxu0 0.0
    %1853 = vmatpush1.msra.mxu0 0.0
    %1854 = vmatprep.subr.mxu0 0.0
    %1855 = vmatpush1.msra.mxu0 0.0
    %1856 = vmatprep.subr.mxu0 0.0
    %1857 = vmatpush1.msra.mxu0 0.0
    %1858 = vmatprep.subr.mxu0 0.0
    %1859 = vmatpush1.msra.mxu0 0.0
    %1860 = vmatprep.subr.mxu0 0.0
    %1861 = vmatpush1.msra.mxu0 0.0
    %1862 = vmatprep.subr.mxu0 0.0
    %1863 = vmatpush1.msra.mxu0 0.0
    %1864 = vmatprep.subr.mxu0 0.0
    %1865 = vmatpush1.msra.mxu0 0.0
    %1866 = vmatprep.subr.mxu0 0.0
    %1867 = vmatpush1.msra.mxu0 0.0
    %1868 = vmatprep.subr.mxu0 0.0
    %1869 = vmatpush1.msra.mxu0 0.0
    %1870 = vmatprep.subr.mxu0 0.0
    %1871 = vmatpush1.msra.mxu0 0.0
    %1872 = vmatprep.subr.mxu0 0.0
    %1873 = vmatpush1.msra.mxu0 0.0
    %1874 = vmatprep.subr.mxu0 0.0
    %1875 = vmatpush1.msra.mxu0 0.0
    %1876 = vmatprep.subr.mxu0 0.0
    %1877 = vmatpush1.msra.mxu0 0.0
    %1878 = vmatprep.subr.mxu0 0.0
    %1879 = vmatpush1.msra.mxu0 0.0
    %1880 = vmatprep.subr.mxu0 0.0
    %1881 = vmatpush1.msra.mxu0 0.0
    %1882 = vmatprep.subr.mxu0 0.0
    %1883 = vmatpush1.msra.mxu0 0.0
    %1884 = vmatprep.subr.mxu0 0.0
    %1885 = vmatpush1.msra.mxu0 0.0
    %1886 = vmatprep.subr.mxu0 0.0
    %1887 = vmatpush1.msra.mxu0 0.0
    %1888 = vmatprep.subr.mxu0 0.0
    %1889 = vmatpush1.msra.mxu0 0.0
    %1890 = vmatprep.subr.mxu0 0.0
    %1891 = vmatpush1.msra.mxu0 0.0
    %1892 = vmatprep.subr.mxu0 0.0
    %1893 = vmatpush1.msra.mxu0 0.0
    %1894 = vmatprep.subr.mxu0 0.0
    %1895 = vmatpush1.msra.mxu0 0.0
    %1896 = vmatprep.subr.mxu0 0.0
    %1897 = vmatpush1.msra.mxu0 0.0
    %1898 = vmatprep.subr.mxu0 0.0
    %1899 = vmatpush1.msra.mxu0 0.0
    %1900 = vmatprep.subr.mxu0 0.0
    %1901 = vmatpush1.msra.mxu0 0.0
    %1902 = vmatprep.subr.mxu0 0.0
    %1903 = vmatpush1.msra.mxu0 0.0
    %1904 = vmatprep.subr.mxu0 0.0
    %1905 = vmatpush1.msra.mxu0 0.0
    %1906 = vmatprep.subr.mxu0 0.0
    %1907 = vmatpush1.msra.mxu0 0.0
    %1908 = vmatprep.subr.mxu0 0.0
    %1909 = vmatpush1.msra.mxu0 0.0
    %1910 = vmatprep.subr.mxu0 0.0
    %1911 = vmatpush1.msra.mxu0 0.0
    %1912 = vmatprep.mubr.f32.mxu0 0.0
    %v1913 = vand.u32 %v1531, 4294901760
    %1914 = vmatmul.mubr.f32.gmra.mrb[0].mxu0 %v1913
    %v1915 = vpop.f32.mrb[0].mxu0
    %v1916 = vadd.f32 %v1839, %v1915
    %v1917 = vpop.f32.mrb[0].mxu0
    %1918 = vdwg.mxu0
    %1919 = vmatprep.subr.mxu0 0.0
    %v1920 = vand.u32 %v1521, 4294901760
    %1921 = vmatpush1.msra.mxu0 %v1920
    %1922 = vmatprep.subr.mxu0 0.0
    %v1923 = vand.u32 %v1522, 4294901760
    %1924 = vmatpush1.msra.mxu0 %v1923
    %1925 = vmatprep.subr.mxu0 0.0
    %1926 = vmatpush1.msra.mxu0 0.0
    %1927 = vmatprep.subr.mxu0 0.0
    %1928 = vmatpush1.msra.mxu0 0.0
    %1929 = vmatprep.subr.mxu0 0.0
    %1930 = vmatpush1.msra.mxu0 0.0
    %1931 = vmatprep.subr.mxu0 0.0
    %1932 = vmatpush1.msra.mxu0 0.0
    %1933 = vmatprep.subr.mxu0 0.0
    %1934 = vmatpush1.msra.mxu0 0.0
    %1935 = vmatprep.subr.mxu0 0.0
    %1936 = vmatpush1.msra.mxu0 0.0
    %1937 = vmatprep.subr.mxu0 0.0
    %1938 = vmatpush1.msra.mxu0 0.0
    %1939 = vmatprep.subr.mxu0 0.0
    %1940 = vmatpush1.msra.mxu0 0.0
    %1941 = vmatprep.subr.mxu0 0.0
    %1942 = vmatpush1.msra.mxu0 0.0
    %1943 = vmatprep.subr.mxu0 0.0
    %1944 = vmatpush1.msra.mxu0 0.0
    %1945 = vmatprep.subr.mxu0 0.0
    %1946 = vmatpush1.msra.mxu0 0.0
    %1947 = vmatprep.subr.mxu0 0.0
    %1948 = vmatpush1.msra.mxu0 0.0
    %1949 = vmatprep.subr.mxu0 0.0
    %1950 = vmatpush1.msra.mxu0 0.0
    %1951 = vmatprep.subr.mxu0 0.0
    %1952 = vmatpush1.msra.mxu0 0.0
    %1953 = vmatprep.subr.mxu0 0.0
    %1954 = vmatpush1.msra.mxu0 0.0
    %1955 = vmatprep.subr.mxu0 0.0
    %1956 = vmatpush1.msra.mxu0 0.0
    %1957 = vmatprep.subr.mxu0 0.0
    %1958 = vmatpush1.msra.mxu0 0.0
    %1959 = vmatprep.subr.mxu0 0.0
    %1960 = vmatpush1.msra.mxu0 0.0
    %1961 = vmatprep.subr.mxu0 0.0
    %1962 = vmatpush1.msra.mxu0 0.0
    %1963 = vmatprep.subr.mxu0 0.0
    %1964 = vmatpush1.msra.mxu0 0.0
    %1965 = vmatprep.subr.mxu0 0.0
    %1966 = vmatpush1.msra.mxu0 0.0
    %1967 = vmatprep.subr.mxu0 0.0
    %1968 = vmatpush1.msra.mxu0 0.0
    %1969 = vmatprep.subr.mxu0 0.0
    %1970 = vmatpush1.msra.mxu0 0.0
    %1971 = vmatprep.subr.mxu0 0.0
    %1972 = vmatpush1.msra.mxu0 0.0
    %1973 = vmatprep.subr.mxu0 0.0
    %1974 = vmatpush1.msra.mxu0 0.0
    %1975 = vmatprep.subr.mxu0 0.0
    %1976 = vmatpush1.msra.mxu0 0.0
    %1977 = vmatprep.subr.mxu0 0.0
    %1978 = vmatpush1.msra.mxu0 0.0
    %1979 = vmatprep.subr.mxu0 0.0
    %1980 = vmatpush1.msra.mxu0 0.0
    %1981 = vmatprep.subr.mxu0 0.0
    %1982 = vmatpush1.msra.mxu0 0.0
    %1983 = vmatprep.subr.mxu0 0.0
    %1984 = vmatpush1.msra.mxu0 0.0
    %1985 = vmatprep.mubr.f32.mxu0 0.0
    %v1986 = vand.u32 %v1531, 4294901760
    %1987 = vmatmul.mubr.f32.gmra.mrb[0].mxu0 %v1986
    %v1988 = vpop.f32.mrb[0].mxu0
    %v1989 = vadd.f32 %v1916, %v1988
    %v1990 = vpop.f32.mrb[0].mxu0
    %1991 = vdwg.mxu0
    %v1992 = vtanh.pop %v1989
    %v1993 = vsub.f32 0.0, %v1992
    %v1994 = vmul.f32 %v1993, 1.442695
    %v1995 = vpow.pop %v1994
    %v1996 = vmul.f32 %v1995, 0.5
    %v1997 = vsub.f32 %v1518, %v50
    %v1998 = vmul.f32 %v1997, %v1997
    %v1999 = vsub.f32 0.0, %v1998
    %v2000 = vmul.f32 %v1999, %v1996
    %v2001 = vmul.f32 %v1992, 0.5
    %v2002 = vsub.f32 %v2000, %v2001
    %v2003 = vsel %vm62, %v2002, 0.0
    %2004 = vadd.xlane.f32.xlu0 %v2003
    %v2005 = vpop.xlane.xlu0 %2004
    %v2006 = vld [vmem:[#allocation2] sm:$0x1]
    %v2007 = vsel %vm62, %v50, 0.0
    %v2008 = vrot.slane %v2007, 4
    %v2009 = vadd.f32 %v2007, %v2008
    %v2010 = vrot.slane %v2009, 2
    %v2011 = vadd.f32 %v2009, %v2010
    %v2012 = vrot.slane %v2011, 1
    %v2013 = vadd.f32 %v2011, %v2012
    %v2014 = vadd.f32 %v2006, %v2013
    %vm2015 = vcmask 253952
    %2016 = vst.msk [vmem:[#allocation2] sm:$0x1] %vm2015, %v2014
    %v2017 = vld [vmem:[#allocation3] sm:$0x1]
    %v2018 = vmul.f32 %v50, %v50
    %v2019 = vsel %vm62, %v2018, 0.0
    %v2020 = vrot.slane %v2019, 4
    %v2021 = vadd.f32 %v2019, %v2020
    %v2022 = vrot.slane %v2021, 2
    %v2023 = vadd.f32 %v2021, %v2022
    %v2024 = vrot.slane %v2023, 1
    %v2025 = vadd.f32 %v2023, %v2024
    %v2026 = vadd.f32 %v2017, %v2025
    %2027 = vst.msk [vmem:[#allocation3] sm:$0x1] %vm2015, %v2026
    %v2028 = vld [vmem:[#allocation4] sm:$0x1]
    %v2029 = vsel %vm62, %v1996, 0.0
    %v2030 = vrot.slane %v2029, 4
    %v2031 = vadd.f32 %v2029, %v2030
    %v2032 = vrot.slane %v2031, 2
    %v2033 = vadd.f32 %v2031, %v2032
    %v2034 = vrot.slane %v2033, 1
    %v2035 = vadd.f32 %v2033, %v2034
    %v2036 = vadd.f32 %v2028, %v2035
    %2037 = vst.msk [vmem:[#allocation4] sm:$0x1] %vm2015, %v2036
    %v2038 = vld [vmem:[#allocation5] sm:$0x1]
    %v2039 = vmul.f32 %v1518, %v1995
    %v2040 = vsel %vm62, %v2039, 0.0
    %v2041 = vrot.slane %v2040, 4
    %v2042 = vadd.f32 %v2040, %v2041
    %v2043 = vrot.slane %v2042, 2
    %v2044 = vadd.f32 %v2042, %v2043
    %v2045 = vrot.slane %v2044, 1
    %v2046 = vadd.f32 %v2044, %v2045
    %v2047 = vadd.f32 %v2038, %v2046
    %2048 = vst.msk [vmem:[#allocation5] sm:$0x1] %vm2015, %v2047
    %v2049 = vld [vmem:[#allocation6] sm:$0x1]
    %v2050 = vmul.f32 %v1518, %v1518
    %v2051 = vmul.f32 %v2050, %v1996
    %v2052 = vsel %vm62, %v2051, 0.0
    %v2053 = vrot.slane %v2052, 4
    %v2054 = vadd.f32 %v2052, %v2053
    %v2055 = vrot.slane %v2054, 2
    %v2056 = vadd.f32 %v2054, %v2055
    %v2057 = vrot.slane %v2056, 1
    %v2058 = vadd.f32 %v2056, %v2057
    %v2059 = vadd.f32 %v2049, %v2058
    %2060 = vst.msk [vmem:[#allocation6] sm:$0x1] %vm2015, %v2059
    %v2061 = vld [vmem:[#allocation7] sm:$0x1]
    %v2062 = vrot.slane %v2005, 4
    %v2063 = vadd.f32 %v2005, %v2062
    %v2064 = vrot.slane %v2063, 2
    %v2065 = vadd.f32 %v2063, %v2064
    %v2066 = vrot.slane %v2065, 1
    %v2067 = vadd.f32 %v2065, %v2066
    %v2068 = vadd.f32 %v2061, %v2067
    %vm2069 = vcmask 0
    %2070 = vst.msk [vmem:[#allocation7] sm:$0x1] %vm2069, %v2068
    %v2071 = vld [vmem:[#allocation8] sm:$0x1]
    %v2072 = vsel %vm62, %v1992, 0.0
    %2073 = vadd.xlane.f32.xlu0 %v2072
    %v2074 = vpop.xlane.xlu0 %2073
    %v2075 = vrot.slane %v2074, 4
    %v2076 = vadd.f32 %v2074, %v2075
    %v2077 = vrot.slane %v2076, 2
    %v2078 = vadd.f32 %v2076, %v2077
    %v2079 = vrot.slane %v2078, 1
    %v2080 = vadd.f32 %v2078, %v2079
    %v2081 = vadd.f32 %v2071, %v2080
    %2082 = vst.msk [vmem:[#allocation8] sm:$0x1] %vm2069, %v2081
    // Predicated region
    $region46: #{tpu_custom_call.1} parent=1 // pred_check
      %p2083 = pneg %p36
    $region47: #{tpu_custom_call.1} parent=1 // pred_check_branch
      %2085 = sbr.rel (%p2083) target = $region49
    $region48: #{tpu_custom_call.1} parent=1 // pred_region
      %v2086 = vld [vmem:[#allocation5] sm:$0x1]
      %v2087 = vld [vmem:[#allocation2] sm:$0x1]
      %v2088 = vmul.f32 %v2086, %v2087
      %v2089 = vld [vmem:[#allocation4] sm:$0x1]
      %v2090 = vld [vmem:[#allocation3] sm:$0x1]
      %v2091 = vmul.f32 %v2089, %v2090
      %v2092 = vsub.f32 %v2088, %v2091
      %v2093 = vld [vmem:[#allocation6] sm:$0x1]
      %v2094 = vmul.f32 %v2093, 8.0
      %v2095 = vsub.f32 %v2092, %v2094
      %v2096 = vsel %vm2015, %v2095, 0.0
      %2097 = vadd.xlane.f32.xlu0 %v2096
      %v2098 = vpop.xlane.xlu0 %2097
      %v2099 = vld [vmem:[#allocation8] sm:$0x1]
      %v2100 = vmul.f32 %v2099, 4.0
      %v2101 = vsub.f32 %v2098, %v2100
      %v2102 = vld [vmem:[#allocation7] sm:$0x1]
      %v2103 = vrcp.pop 8.0
      %v2104 = vmul.f32 %v2102, %v2103
      %v2105 = vrcp.pop 64.0
      %v2106 = vmul.f32 %v2101, %v2105
      %v2107 = vsub.f32 %v2104, %v2106
      %v2108 = vsub.f32 %v2107, 2.9445069e-10
      %2109 = vst.msk [vmem:[#allocation9] sm:$0x1] %vm2069, %v2108
    $region49: #{tpu_custom_call.1} parent=1 // pred_fallthru
      _
    // Predicated region
    $region50: #{tpu_custom_call.1} parent=1 // pred_check
      _
    $region51: #{tpu_custom_call.1} parent=1 // pred_check_branch
      %2111 = sbr.rel (0) target = $region53
    $region52: #{tpu_custom_call.1} parent=1 // pred_region
      %s2113 = ssub.s32 16, 16
      %2114 = vsyncadd [#allocation10], %s2113
      %s2116 = sshll.u32 [#allocation9], 4
      %s2117 = int_to_ptr.vmem [resolvable:$true] %s2116
      %2119 = dma.vmem_to_hbm [thread:$0]  %s2117, 16, %s10, [#allocation10]
    $region53: #{tpu_custom_call.1} parent=1 // pred_fallthru
      _
    // Predicated region
    $region54: #{tpu_custom_call.1} parent=1 // pred_check
      _
    $region55: #{tpu_custom_call.1} parent=1 // pred_check_branch
      %2121 = sbr.rel (0) target = $region57
    $region56: #{tpu_custom_call.1} parent=1 // pred_region
      %2122 = dma.done [#allocation10], 16
    $region57: #{tpu_custom_call.1} parent=1 // pred_fallthru
      _
    %2123 = vsyncpa [#allocation10], 1

</llo_original>
